<compile_context>
chip_gen: v7x
topology: tpu7x:2x2x1
jax: 0.10.0
libtpu: 0.0.40
codegen_flags: <defaults>
</compile_context>

<pallas_src>
import math

import jax
import jax.numpy as jnp
from jax import lax
from jax.experimental import pallas as pl
from jax.experimental.pallas import tpu as pltpu

KSIZE = 7
PAD = (KSIZE - 1) // 2


# ----------------------------- kernel ---------------------------------------
def _pool_and_pack(xb, axis, pad_ref, lhs_ref, b):
    """Pool one element over `axis`, im2col the kh taps into lhs_ref rows of b.

    xb      : (C, H, W) f32 value.
    pad_ref : VMEM (S1 + 2*PAD, 2*S2) scratch for the zero-padded [max|avg]
              plane of this branch.
    lhs_ref : VMEM (Bt*S1, KSIZE*2*S2) matmul-LHS scratch for this branch.
    """
    inv = 1.0 / xb.shape[axis]
    pmax = jnp.max(xb, axis=axis)                      # (S1, S2)
    pavg = jnp.sum(xb, axis=axis) * inv                # (S1, S2)
    S1, S2 = pmax.shape

    # Zero-padded [max | avg] plane: rows [0, PAD) and [PAD+S1, PAD+S1+PAD)
    # are the kh-direction zero padding.
    pad_ref[0:PAD, :] = jnp.zeros((PAD, 2 * S2), jnp.float32)
    pad_ref[PAD + S1:PAD + S1 + PAD, :] = jnp.zeros((PAD, 2 * S2), jnp.float32)
    pad_ref[PAD:PAD + S1, 0:S2] = pmax
    pad_ref[PAD:PAD + S1, S2:2 * S2] = pavg

    # kh-tap im2col: lhs[b*S1 + i, kh*2*S2 + c] = padded_plane[i + kh, c].
    # These are cheap offset VMEM copies (no MXU, no big shift matrices).
    for kh in range(KSIZE):
        piece = pad_ref[kh:kh + S1, :]                 # (S1, 2*S2)
        lhs_ref[b * S1:(b + 1) * S1, kh * 2 * S2:(kh + 1) * 2 * S2] = piece


def _branch_gate(lhs_ref, t_ref, shift, g_ref):
    """g = sigmoid(lhs @ T + shift): one MXU matmul per branch (bf16 in, f32 acc)."""
    lhs = lhs_ref[...].astype(t_ref.dtype)
    conv = jnp.dot(lhs, t_ref[...], preferred_element_type=jnp.float32)
    g_ref[...] = jax.nn.sigmoid(conv + shift)


def _mvdfe_kernel(shift_ref, x_ref, thw_ref, tcw_ref, thc_ref, o_ref,
                  pad_hw, pad_cw, pad_hc, lhs_hw, lhs_cw, lhs_hc,
                  ghw_ref, gcw_ref, ghc_ref):
    # shift_ref : SMEM f32[3]            folded BN shifts (hw, cw, hc)
    # x_ref     : VMEM f32[Bt, C, H, W]  Bt batch elements (native layout)
    # t*_ref    : VMEM fused banded conv weights (BN scale folded, bf16)
    # o_ref     : VMEM f32[Bt, C, H, W]
    Bt, C, H, W = x_ref.shape

    # Pool + im2col each element into the per-branch matmul operands.
    for b in range(Bt):
        xb = x_ref[b]                                   # (C, H, W)
        _pool_and_pack(xb, 0, pad_hw, lhs_hw, b)        # (H, W) plane
        _pool_and_pack(xb, 1, pad_cw, lhs_cw, b)        # (C, W) plane
        _pool_and_pack(xb, 2, pad_hc, lhs_hc, b)        # (C, H) plane (transposed)

    # One wide matmul per branch (Bt elements stacked along M).
    _branch_gate(lhs_hw, thw_ref, shift_ref[0], ghw_ref)   # (Bt*H, W)
    _branch_gate(lhs_cw, tcw_ref, shift_ref[1], gcw_ref)   # (Bt*C, W)
    _branch_gate(lhs_hc, thc_ref, shift_ref[2], ghc_ref)   # (Bt*C, H)

    third = 1.0 / 3.0
    for b in range(Bt):
        ghw = ghw_ref[b * H:(b + 1) * H, :]             # (H, W)
        gcw = gcw_ref[b * C:(b + 1) * C, :]             # (C, W)
        ghc = ghc_ref[b * C:(b + 1) * C, :]             # (C, H)
        gate = (ghw[None, :, :] + gcw[:, None, :] + ghc[:, :, None]) * third
        o_ref[b] = x_ref[b] * gate


# ------------------------- host-side helpers --------------------------------
def _fused_conv_weights(w, bn_scale, s2, dtype):
    """Fused banded conv weights for one branch.

    w : (2, KSIZE, KSIZE) = (in_ch[max, avg], kh, kw).
    Returns T of shape (KSIZE*2*s2, s2) with
      T[kh*2*s2 + ci*s2 + c, j] = bn_scale * w[ci, kh, c - j + PAD]
    (zero outside the band), so that with
      lhs[i, kh*2*s2 + ci*s2 + c] = p_ci[i + kh - PAD, c]   (zero padded rows)
    the product lhs @ T is the zero-padded 7x7 conv of [p_max, p_avg],
    with the BN scale folded in.
    """
    c = jnp.arange(s2)[:, None]
    j = jnp.arange(s2)[None, :]
    d = c - j + PAD
    valid = (d >= 0) & (d < KSIZE)
    dc = jnp.clip(d, 0, KSIZE - 1)
    band = jnp.where(valid[None, None], w[:, :, dc], 0.0)       # (2, K, s2, s2)
    band = jnp.transpose(band, (1, 0, 2, 3))                    # (K, 2, s2, s2)
    return (band.reshape(KSIZE * 2 * s2, s2) * bn_scale).astype(dtype)


def _pick_bt(B, C, H, W, vmem_budget=4 * 1024 * 1024, max_bt=8):
    """Largest divisor of B (capped) whose x block stays within the VMEM budget."""
    per_elem = C * H * W * 4
    bt = max(1, min(B, max_bt, vmem_budget // max(per_elem, 1)))
    while B % bt:
        bt -= 1
    return bt


def mvdfe_forward(x, params, *, mxu_dtype=jnp.bfloat16, bt=None):
    B, C, H, W = x.shape
    if bt is None:
        bt = _pick_bt(B, C, H, W)
    assert B % bt == 0, (B, bt)

    bn_hw, bn_cw, bn_hc = params["hw_bn"], params["cw_bn"], params["hc_bn"]
    t_hw = _fused_conv_weights(params["hw_w"], bn_hw[0], W, mxu_dtype)
    t_cw = _fused_conv_weights(params["cw_w"], bn_cw[0], W, mxu_dtype)
    # HC branch operates on the transposed (C, H) plane -> swap kh/kw taps.
    t_hc = _fused_conv_weights(jnp.swapaxes(params["hc_w"], 1, 2),
                               bn_hc[0], H, mxu_dtype)
    shifts = jnp.stack([bn_hw[1], bn_cw[1], bn_hc[1]]).astype(jnp.float32)

    k_w = KSIZE * 2 * W
    k_h = KSIZE * 2 * H

    return pl.pallas_call(
        _mvdfe_kernel,
        out_shape=jax.ShapeDtypeStruct((B, C, H, W), jnp.float32),
        grid=(B // bt,),
        in_specs=[
            pl.BlockSpec(memory_space=pltpu.MemorySpace.SMEM),        # shifts
            pl.BlockSpec((bt, C, H, W), lambda b: (b, 0, 0, 0)),      # x
            pl.BlockSpec((k_w, W), lambda b: (0, 0)),                 # t_hw
            pl.BlockSpec((k_w, W), lambda b: (0, 0)),                 # t_cw
            pl.BlockSpec((k_h, H), lambda b: (0, 0)),                 # t_hc
        ],
        out_specs=pl.BlockSpec((bt, C, H, W), lambda b: (b, 0, 0, 0)),
        scratch_shapes=[
            pltpu.VMEM((H + 2 * PAD, 2 * W), jnp.float32),   # pad_hw
            pltpu.VMEM((C + 2 * PAD, 2 * W), jnp.float32),   # pad_cw
            pltpu.VMEM((C + 2 * PAD, 2 * H), jnp.float32),   # pad_hc
            pltpu.VMEM((bt * H, k_w), jnp.float32),          # lhs_hw
            pltpu.VMEM((bt * C, k_w), jnp.float32),          # lhs_cw
            pltpu.VMEM((bt * C, k_h), jnp.float32),          # lhs_hc
            pltpu.VMEM((bt * H, W), jnp.float32),            # g_hw
            pltpu.VMEM((bt * C, W), jnp.float32),            # g_cw
            pltpu.VMEM((bt * C, H), jnp.float32),            # g_hc
        ],
        compiler_params=pltpu.CompilerParams(
            dimension_semantics=("parallel",),
            vmem_limit_bytes=64 * 1024 * 1024),
    )(shifts, x, t_hw, t_cw, t_hc)


# -------------------- pure-JAX reference (correctness) ----------------------
def _branch_ref(x_perm, w, bn):
    pmax = jnp.max(x_perm, axis=1, keepdims=True)
    pavg = jnp.mean(x_perm, axis=1, keepdims=True)
    pooled = jnp.concatenate([pmax, pavg], axis=1)            # (B, 2, S1, S2)
    conv = lax.conv_general_dilated(
        pooled, w[None], window_strides=(1, 1),
        padding=((PAD, PAD), (PAD, PAD)),
        dimension_numbers=("NCHW", "OIHW", "NCHW"),
        precision=lax.Precision.HIGHEST)
    scale = jax.nn.sigmoid(conv * bn[0] + bn[1])
    return x_perm * scale


def mvdfe_ref(x, params):
    hw = _branch_ref(x, params["hw_w"], params["hw_bn"])
    cw = jnp.transpose(
        _branch_ref(jnp.transpose(x, (0, 2, 1, 3)), params["cw_w"],
                    params["cw_bn"]), (0, 2, 1, 3))
    hc = jnp.transpose(
        _branch_ref(jnp.transpose(x, (0, 3, 2, 1)), params["hc_w"],
                    params["hc_bn"]), (0, 3, 2, 1))
    return (1.0 / 3.0) * (hw + cw + hc)


if __name__ == "__main__":
    key = jax.random.PRNGKey(0)
    k_x, k1, k2, k3 = jax.random.split(key, 4)
    B, C, H, W = 2, 4, 16, 16
    x = jax.random.normal(k_x, (B, C, H, W), jnp.float32)

    def bn_fold(gamma, beta, mean, var, eps=1e-5):
        s = gamma / math.sqrt(var + eps)
        return jnp.array([s, beta - mean * s], jnp.float32)

    # Conv2d(2, 1, 7, bias=False) weights per branch, shape (2, 7, 7);
    # BatchNorm2d(1) folded to (scale, shift) in inference mode.
    params = {
        "hw_w": 0.1 * jax.random.normal(k1, (2, KSIZE, KSIZE), jnp.float32),
        "hw_bn": bn_fold(1.05, 0.03, 0.02, 1.1),
        "cw_w": 0.1 * jax.random.normal(k2, (2, KSIZE, KSIZE), jnp.float32),
        "cw_bn": bn_fold(0.95, -0.02, -0.01, 0.9),
        "hc_w": 0.1 * jax.random.normal(k3, (2, KSIZE, KSIZE), jnp.float32),
        "hc_bn": bn_fold(1.0, 0.0, 0.0, 1.0),
    }

    out = jax.block_until_ready(jax.jit(mvdfe_forward)(x, params))
    ref = jax.block_until_ready(mvdfe_ref(x, params))

    assert out.shape == x.shape and out.dtype == jnp.float32
    # 2e-2 leaves headroom for the bf16 MXU-operand cast (f32 accumulation);
    # a real indexing / orientation bug produces O(0.1) errors.
    err = float(jnp.max(jnp.abs(out - ref)))
    assert err < 2e-2, f"max abs error too large: {err}"

    print("KERNEL_OK")
</pallas_src>

<mosaic_0001>
module attributes {stable_mosaic.version = 11 : i64} {
  func.func @_mvdfe_kernel(%arg0: i32, %arg1: memref<3xf32, #tpu.memory_space<smem>>, %arg2: memref<2x4x16x16xf32, #tpu.memory_space<vmem>>, %arg3: memref<224x16xbf16, #tpu.memory_space<vmem>>, %arg4: memref<224x16xbf16, #tpu.memory_space<vmem>>, %arg5: memref<224x16xbf16, #tpu.memory_space<vmem>>, %arg6: memref<2x4x16x16xf32, #tpu.memory_space<vmem>>, %arg7: memref<22x32xf32, #tpu.memory_space<vmem>>, %arg8: memref<10x32xf32, #tpu.memory_space<vmem>>, %arg9: memref<10x32xf32, #tpu.memory_space<vmem>>, %arg10: memref<32x224xf32, #tpu.memory_space<vmem>>, %arg11: memref<8x224xf32, #tpu.memory_space<vmem>>, %arg12: memref<8x224xf32, #tpu.memory_space<vmem>>, %arg13: memref<32x16xf32, #tpu.memory_space<vmem>>, %arg14: memref<8x16xf32, #tpu.memory_space<vmem>>, %arg15: memref<8x16xf32, #tpu.memory_space<vmem>>) attributes {dimension_semantics = [#tpu.dimension_semantics<parallel>], iteration_bounds = array<i64: 1>, scalar_prefetch = 0 : i64, scratch_operands = 9 : i64, tpu.core_type = #tpu.core_type<tc>, window_params = [{transform_indices = @transform_0, window_bounds = array<i64: 3>}, {transform_indices = @transform_1, window_bounds = array<i64: 2, 4, 16, 16>}, {pipeline_mode = #tpu.pipeline_mode<synchronous>, transform_indices = @transform_2, window_bounds = array<i64: 224, 16>}, {pipeline_mode = #tpu.pipeline_mode<synchronous>, transform_indices = @transform_3, window_bounds = array<i64: 224, 16>}, {pipeline_mode = #tpu.pipeline_mode<synchronous>, transform_indices = @transform_4, window_bounds = array<i64: 224, 16>}, {transform_indices = @transform_5, window_bounds = array<i64: 2, 4, 16, 16>}]} {
    %c0 = arith.constant 0 : index
    %c0_0 = arith.constant 0 : index
    %c0_1 = arith.constant 0 : index
    %c0_2 = arith.constant 0 : index
    %0 = vector.load %arg2[%c0, %c0_0, %c0_1, %c0_2] : memref<2x4x16x16xf32, #tpu.memory_space<vmem>>, vector<1x4x16x16xf32>
    %1 = vector.shape_cast %0 : vector<1x4x16x16xf32> to vector<4x16x16xf32>
    %cst = arith.constant dense<0xFF800000> : vector<16x16xf32>
    %2 = vector.multi_reduction <maximumf>, %1, %cst [0] : vector<4x16x16xf32> to vector<16x16xf32>
    %cst_3 = arith.constant dense<0.000000e+00> : vector<16x16xf32>
    %3 = vector.multi_reduction <add>, %1, %cst_3 [0] : vector<4x16x16xf32> to vector<16x16xf32>
    %cst_4 = arith.constant 2.500000e-01 : f32
    %4 = vector.broadcast %cst_4 : f32 to vector<16x16xf32>
    %5 = arith.mulf %3, %4 : vector<16x16xf32>
    %cst_5 = arith.constant 0.000000e+00 : f32
    %6 = vector.broadcast %cst_5 : f32 to vector<3x32xf32>
    %c0_6 = arith.constant 0 : index
    %c0_7 = arith.constant 0 : index
    %7 = vector.load %arg7[%c0_6, %c0_7] : memref<22x32xf32, #tpu.memory_space<vmem>>, vector<3x32xf32>
    tpu.vector_store %arg7[%c0_6, %c0_7], %6 {strides = array<i32>} : memref<22x32xf32, #tpu.memory_space<vmem>>, vector<3x32xf32>,
    %cst_8 = arith.constant 0.000000e+00 : f32
    %8 = vector.broadcast %cst_8 : f32 to vector<3x32xf32>
    %c19 = arith.constant 19 : index
    %c0_9 = arith.constant 0 : index
    %9 = vector.load %arg7[%c19, %c0_9] : memref<22x32xf32, #tpu.memory_space<vmem>>, vector<3x32xf32>
    tpu.vector_store %arg7[%c19, %c0_9], %8 {strides = array<i32>} : memref<22x32xf32, #tpu.memory_space<vmem>>, vector<3x32xf32>,
    %c3 = arith.constant 3 : index
    %c0_10 = arith.constant 0 : index
    %10 = vector.load %arg7[%c3, %c0_10] : memref<22x32xf32, #tpu.memory_space<vmem>>, vector<16x16xf32>
    tpu.vector_store %arg7[%c3, %c0_10], %2 {strides = array<i32>} : memref<22x32xf32, #tpu.memory_space<vmem>>, vector<16x16xf32>,
    %c3_11 = arith.constant 3 : index
    %c16 = arith.constant 16 : index
    %11 = vector.load %arg7[%c3_11, %c16] : memref<22x32xf32, #tpu.memory_space<vmem>>, vector<16x16xf32>
    tpu.vector_store %arg7[%c3_11, %c16], %5 {strides = array<i32>} : memref<22x32xf32, #tpu.memory_space<vmem>>, vector<16x16xf32>,
    %c0_12 = arith.constant 0 : index
    %c0_13 = arith.constant 0 : index
    %12 = vector.load %arg7[%c0_12, %c0_13] : memref<22x32xf32, #tpu.memory_space<vmem>>, vector<16x32xf32>
    %c0_14 = arith.constant 0 : index
    %c0_15 = arith.constant 0 : index
    %13 = vector.load %arg10[%c0_14, %c0_15] : memref<32x224xf32, #tpu.memory_space<vmem>>, vector<16x32xf32>
    tpu.vector_store %arg10[%c0_14, %c0_15], %12 {strides = array<i32>} : memref<32x224xf32, #tpu.memory_space<vmem>>, vector<16x32xf32>,
    %c1 = arith.constant 1 : index
    %c0_16 = arith.constant 0 : index
    %14 = vector.load %arg7[%c1, %c0_16] : memref<22x32xf32, #tpu.memory_space<vmem>>, vector<16x32xf32>
    %c0_17 = arith.constant 0 : index
    %c32 = arith.constant 32 : index
    %15 = vector.load %arg10[%c0_17, %c32] : memref<32x224xf32, #tpu.memory_space<vmem>>, vector<16x32xf32>
    tpu.vector_store %arg10[%c0_17, %c32], %14 {strides = array<i32>} : memref<32x224xf32, #tpu.memory_space<vmem>>, vector<16x32xf32>,
    %c2 = arith.constant 2 : index
    %c0_18 = arith.constant 0 : index
    %16 = vector.load %arg7[%c2, %c0_18] : memref<22x32xf32, #tpu.memory_space<vmem>>, vector<16x32xf32>
    %c0_19 = arith.constant 0 : index
    %c64 = arith.constant 64 : index
    %17 = vector.load %arg10[%c0_19, %c64] : memref<32x224xf32, #tpu.memory_space<vmem>>, vector<16x32xf32>
    tpu.vector_store %arg10[%c0_19, %c64], %16 {strides = array<i32>} : memref<32x224xf32, #tpu.memory_space<vmem>>, vector<16x32xf32>,
    %c3_20 = arith.constant 3 : index
    %c0_21 = arith.constant 0 : index
    %18 = vector.load %arg7[%c3_20, %c0_21] : memref<22x32xf32, #tpu.memory_space<vmem>>, vector<16x32xf32>
    %c0_22 = arith.constant 0 : index
    %c96 = arith.constant 96 : index
    %19 = vector.load %arg10[%c0_22, %c96] : memref<32x224xf32, #tpu.memory_space<vmem>>, vector<16x32xf32>
    tpu.vector_store %arg10[%c0_22, %c96], %18 {strides = array<i32>} : memref<32x224xf32, #tpu.memory_space<vmem>>, vector<16x32xf32>,
    %c4 = arith.constant 4 : index
    %c0_23 = arith.constant 0 : index
    %20 = vector.load %arg7[%c4, %c0_23] : memref<22x32xf32, #tpu.memory_space<vmem>>, vector<16x32xf32>
    %c0_24 = arith.constant 0 : index
    %c128 = arith.constant 128 : index
    %21 = vector.load %arg10[%c0_24, %c128] : memref<32x224xf32, #tpu.memory_space<vmem>>, vector<16x32xf32>
    tpu.vector_store %arg10[%c0_24, %c128], %20 {strides = array<i32>} : memref<32x224xf32, #tpu.memory_space<vmem>>, vector<16x32xf32>,
    %c5 = arith.constant 5 : index
    %c0_25 = arith.constant 0 : index
    %22 = vector.load %arg7[%c5, %c0_25] : memref<22x32xf32, #tpu.memory_space<vmem>>, vector<16x32xf32>
    %c0_26 = arith.constant 0 : index
    %c160 = arith.constant 160 : index
    %23 = vector.load %arg10[%c0_26, %c160] : memref<32x224xf32, #tpu.memory_space<vmem>>, vector<16x32xf32>
    tpu.vector_store %arg10[%c0_26, %c160], %22 {strides = array<i32>} : memref<32x224xf32, #tpu.memory_space<vmem>>, vector<16x32xf32>,
    %c6 = arith.constant 6 : index
    %c0_27 = arith.constant 0 : index
    %24 = vector.load %arg7[%c6, %c0_27] : memref<22x32xf32, #tpu.memory_space<vmem>>, vector<16x32xf32>
    %c0_28 = arith.constant 0 : index
    %c192 = arith.constant 192 : index
    %25 = vector.load %arg10[%c0_28, %c192] : memref<32x224xf32, #tpu.memory_space<vmem>>, vector<16x32xf32>
    tpu.vector_store %arg10[%c0_28, %c192], %24 {strides = array<i32>} : memref<32x224xf32, #tpu.memory_space<vmem>>, vector<16x32xf32>,
    %cst_29 = arith.constant dense<0xFF800000> : vector<4x16xf32>
    %26 = vector.multi_reduction <maximumf>, %1, %cst_29 [1] : vector<4x16x16xf32> to vector<4x16xf32>
    %cst_30 = arith.constant dense<0.000000e+00> : vector<4x16xf32>
    %27 = vector.multi_reduction <add>, %1, %cst_30 [1] : vector<4x16x16xf32> to vector<4x16xf32>
    %cst_31 = arith.constant 6.250000e-02 : f32
    %28 = vector.broadcast %cst_31 : f32 to vector<4x16xf32>
    %29 = arith.mulf %27, %28 : vector<4x16xf32>
    %cst_32 = arith.constant 0.000000e+00 : f32
    %30 = vector.broadcast %cst_32 : f32 to vector<3x32xf32>
    %c0_33 = arith.constant 0 : index
    %c0_34 = arith.constant 0 : index
    %31 = vector.load %arg8[%c0_33, %c0_34] : memref<10x32xf32, #tpu.memory_space<vmem>>, vector<3x32xf32>
    tpu.vector_store %arg8[%c0_33, %c0_34], %30 {strides = array<i32>} : memref<10x32xf32, #tpu.memory_space<vmem>>, vector<3x32xf32>,
    %cst_35 = arith.constant 0.000000e+00 : f32
    %32 = vector.broadcast %cst_35 : f32 to vector<3x32xf32>
    %c7 = arith.constant 7 : index
    %c0_36 = arith.constant 0 : index
    %33 = vector.load %arg8[%c7, %c0_36] : memref<10x32xf32, #tpu.memory_space<vmem>>, vector<3x32xf32>
    tpu.vector_store %arg8[%c7, %c0_36], %32 {strides = array<i32>} : memref<10x32xf32, #tpu.memory_space<vmem>>, vector<3x32xf32>,
    %c3_37 = arith.constant 3 : index
    %c0_38 = arith.constant 0 : index
    %34 = vector.load %arg8[%c3_37, %c0_38] : memref<10x32xf32, #tpu.memory_space<vmem>>, vector<4x16xf32>
    tpu.vector_store %arg8[%c3_37, %c0_38], %26 {strides = array<i32>} : memref<10x32xf32, #tpu.memory_space<vmem>>, vector<4x16xf32>,
    %c3_39 = arith.constant 3 : index
    %c16_40 = arith.constant 16 : index
    %35 = vector.load %arg8[%c3_39, %c16_40] : memref<10x32xf32, #tpu.memory_space<vmem>>, vector<4x16xf32>
    tpu.vector_store %arg8[%c3_39, %c16_40], %29 {strides = array<i32>} : memref<10x32xf32, #tpu.memory_space<vmem>>, vector<4x16xf32>,
    %c0_41 = arith.constant 0 : index
    %c0_42 = arith.constant 0 : index
    %36 = vector.load %arg8[%c0_41, %c0_42] : memref<10x32xf32, #tpu.memory_space<vmem>>, vector<4x32xf32>
    %c0_43 = arith.constant 0 : index
    %c0_44 = arith.constant 0 : index
    %37 = vector.load %arg11[%c0_43, %c0_44] : memref<8x224xf32, #tpu.memory_space<vmem>>, vector<4x32xf32>
    tpu.vector_store %arg11[%c0_43, %c0_44], %36 {strides = array<i32>} : memref<8x224xf32, #tpu.memory_space<vmem>>, vector<4x32xf32>,
    %c1_45 = arith.constant 1 : index
    %c0_46 = arith.constant 0 : index
    %38 = vector.load %arg8[%c1_45, %c0_46] : memref<10x32xf32, #tpu.memory_space<vmem>>, vector<4x32xf32>
    %c0_47 = arith.constant 0 : index
    %c32_48 = arith.constant 32 : index
    %39 = vector.load %arg11[%c0_47, %c32_48] : memref<8x224xf32, #tpu.memory_space<vmem>>, vector<4x32xf32>
    tpu.vector_store %arg11[%c0_47, %c32_48], %38 {strides = array<i32>} : memref<8x224xf32, #tpu.memory_space<vmem>>, vector<4x32xf32>,
    %c2_49 = arith.constant 2 : index
    %c0_50 = arith.constant 0 : index
    %40 = vector.load %arg8[%c2_49, %c0_50] : memref<10x32xf32, #tpu.memory_space<vmem>>, vector<4x32xf32>
    %c0_51 = arith.constant 0 : index
    %c64_52 = arith.constant 64 : index
    %41 = vector.load %arg11[%c0_51, %c64_52] : memref<8x224xf32, #tpu.memory_space<vmem>>, vector<4x32xf32>
    tpu.vector_store %arg11[%c0_51, %c64_52], %40 {strides = array<i32>} : memref<8x224xf32, #tpu.memory_space<vmem>>, vector<4x32xf32>,
    %c3_53 = arith.constant 3 : index
    %c0_54 = arith.constant 0 : index
    %42 = vector.load %arg8[%c3_53, %c0_54] : memref<10x32xf32, #tpu.memory_space<vmem>>, vector<4x32xf32>
    %c0_55 = arith.constant 0 : index
    %c96_56 = arith.constant 96 : index
    %43 = vector.load %arg11[%c0_55, %c96_56] : memref<8x224xf32, #tpu.memory_space<vmem>>, vector<4x32xf32>
    tpu.vector_store %arg11[%c0_55, %c96_56], %42 {strides = array<i32>} : memref<8x224xf32, #tpu.memory_space<vmem>>, vector<4x32xf32>,
    %c4_57 = arith.constant 4 : index
    %c0_58 = arith.constant 0 : index
    %44 = vector.load %arg8[%c4_57, %c0_58] : memref<10x32xf32, #tpu.memory_space<vmem>>, vector<4x32xf32>
    %c0_59 = arith.constant 0 : index
    %c128_60 = arith.constant 128 : index
    %45 = vector.load %arg11[%c0_59, %c128_60] : memref<8x224xf32, #tpu.memory_space<vmem>>, vector<4x32xf32>
    tpu.vector_store %arg11[%c0_59, %c128_60], %44 {strides = array<i32>} : memref<8x224xf32, #tpu.memory_space<vmem>>, vector<4x32xf32>,
    %c5_61 = arith.constant 5 : index
    %c0_62 = arith.constant 0 : index
    %46 = vector.load %arg8[%c5_61, %c0_62] : memref<10x32xf32, #tpu.memory_space<vmem>>, vector<4x32xf32>
    %c0_63 = arith.constant 0 : index
    %c160_64 = arith.constant 160 : index
    %47 = vector.load %arg11[%c0_63, %c160_64] : memref<8x224xf32, #tpu.memory_space<vmem>>, vector<4x32xf32>
    tpu.vector_store %arg11[%c0_63, %c160_64], %46 {strides = array<i32>} : memref<8x224xf32, #tpu.memory_space<vmem>>, vector<4x32xf32>,
    %c6_65 = arith.constant 6 : index
    %c0_66 = arith.constant 0 : index
    %48 = vector.load %arg8[%c6_65, %c0_66] : memref<10x32xf32, #tpu.memory_space<vmem>>, vector<4x32xf32>
    %c0_67 = arith.constant 0 : index
    %c192_68 = arith.constant 192 : index
    %49 = vector.load %arg11[%c0_67, %c192_68] : memref<8x224xf32, #tpu.memory_space<vmem>>, vector<4x32xf32>
    tpu.vector_store %arg11[%c0_67, %c192_68], %48 {strides = array<i32>} : memref<8x224xf32, #tpu.memory_space<vmem>>, vector<4x32xf32>,
    %cst_69 = arith.constant dense<0xFF800000> : vector<4x16xf32>
    %50 = vector.multi_reduction <maximumf>, %1, %cst_69 [2] : vector<4x16x16xf32> to vector<4x16xf32>
    %cst_70 = arith.constant dense<0.000000e+00> : vector<4x16xf32>
    %51 = vector.multi_reduction <add>, %1, %cst_70 [2] : vector<4x16x16xf32> to vector<4x16xf32>
    %cst_71 = arith.constant 6.250000e-02 : f32
    %52 = vector.broadcast %cst_71 : f32 to vector<4x16xf32>
    %53 = arith.mulf %51, %52 : vector<4x16xf32>
    %cst_72 = arith.constant 0.000000e+00 : f32
    %54 = vector.broadcast %cst_72 : f32 to vector<3x32xf32>
    %c0_73 = arith.constant 0 : index
    %c0_74 = arith.constant 0 : index
    %55 = vector.load %arg9[%c0_73, %c0_74] : memref<10x32xf32, #tpu.memory_space<vmem>>, vector<3x32xf32>
    tpu.vector_store %arg9[%c0_73, %c0_74], %54 {strides = array<i32>} : memref<10x32xf32, #tpu.memory_space<vmem>>, vector<3x32xf32>,
    %cst_75 = arith.constant 0.000000e+00 : f32
    %56 = vector.broadcast %cst_75 : f32 to vector<3x32xf32>
    %c7_76 = arith.constant 7 : index
    %c0_77 = arith.constant 0 : index
    %57 = vector.load %arg9[%c7_76, %c0_77] : memref<10x32xf32, #tpu.memory_space<vmem>>, vector<3x32xf32>
    tpu.vector_store %arg9[%c7_76, %c0_77], %56 {strides = array<i32>} : memref<10x32xf32, #tpu.memory_space<vmem>>, vector<3x32xf32>,
    %c3_78 = arith.constant 3 : index
    %c0_79 = arith.constant 0 : index
    %58 = vector.load %arg9[%c3_78, %c0_79] : memref<10x32xf32, #tpu.memory_space<vmem>>, vector<4x16xf32>
    tpu.vector_store %arg9[%c3_78, %c0_79], %50 {strides = array<i32>} : memref<10x32xf32, #tpu.memory_space<vmem>>, vector<4x16xf32>,
    %c3_80 = arith.constant 3 : index
    %c16_81 = arith.constant 16 : index
    %59 = vector.load %arg9[%c3_80, %c16_81] : memref<10x32xf32, #tpu.memory_space<vmem>>, vector<4x16xf32>
    tpu.vector_store %arg9[%c3_80, %c16_81], %53 {strides = array<i32>} : memref<10x32xf32, #tpu.memory_space<vmem>>, vector<4x16xf32>,
    %c0_82 = arith.constant 0 : index
    %c0_83 = arith.constant 0 : index
    %60 = vector.load %arg9[%c0_82, %c0_83] : memref<10x32xf32, #tpu.memory_space<vmem>>, vector<4x32xf32>
    %c0_84 = arith.constant 0 : index
    %c0_85 = arith.constant 0 : index
    %61 = vector.load %arg12[%c0_84, %c0_85] : memref<8x224xf32, #tpu.memory_space<vmem>>, vector<4x32xf32>
    tpu.vector_store %arg12[%c0_84, %c0_85], %60 {strides = array<i32>} : memref<8x224xf32, #tpu.memory_space<vmem>>, vector<4x32xf32>,
    %c1_86 = arith.constant 1 : index
    %c0_87 = arith.constant 0 : index
    %62 = vector.load %arg9[%c1_86, %c0_87] : memref<10x32xf32, #tpu.memory_space<vmem>>, vector<4x32xf32>
    %c0_88 = arith.constant 0 : index
    %c32_89 = arith.constant 32 : index
    %63 = vector.load %arg12[%c0_88, %c32_89] : memref<8x224xf32, #tpu.memory_space<vmem>>, vector<4x32xf32>
    tpu.vector_store %arg12[%c0_88, %c32_89], %62 {strides = array<i32>} : memref<8x224xf32, #tpu.memory_space<vmem>>, vector<4x32xf32>,
    %c2_90 = arith.constant 2 : index
    %c0_91 = arith.constant 0 : index
    %64 = vector.load %arg9[%c2_90, %c0_91] : memref<10x32xf32, #tpu.memory_space<vmem>>, vector<4x32xf32>
    %c0_92 = arith.constant 0 : index
    %c64_93 = arith.constant 64 : index
    %65 = vector.load %arg12[%c0_92, %c64_93] : memref<8x224xf32, #tpu.memory_space<vmem>>, vector<4x32xf32>
    tpu.vector_store %arg12[%c0_92, %c64_93], %64 {strides = array<i32>} : memref<8x224xf32, #tpu.memory_space<vmem>>, vector<4x32xf32>,
    %c3_94 = arith.constant 3 : index
    %c0_95 = arith.constant 0 : index
    %66 = vector.load %arg9[%c3_94, %c0_95] : memref<10x32xf32, #tpu.memory_space<vmem>>, vector<4x32xf32>
    %c0_96 = arith.constant 0 : index
    %c96_97 = arith.constant 96 : index
    %67 = vector.load %arg12[%c0_96, %c96_97] : memref<8x224xf32, #tpu.memory_space<vmem>>, vector<4x32xf32>
    tpu.vector_store %arg12[%c0_96, %c96_97], %66 {strides = array<i32>} : memref<8x224xf32, #tpu.memory_space<vmem>>, vector<4x32xf32>,
    %c4_98 = arith.constant 4 : index
    %c0_99 = arith.constant 0 : index
    %68 = vector.load %arg9[%c4_98, %c0_99] : memref<10x32xf32, #tpu.memory_space<vmem>>, vector<4x32xf32>
    %c0_100 = arith.constant 0 : index
    %c128_101 = arith.constant 128 : index
    %69 = vector.load %arg12[%c0_100, %c128_101] : memref<8x224xf32, #tpu.memory_space<vmem>>, vector<4x32xf32>
    tpu.vector_store %arg12[%c0_100, %c128_101], %68 {strides = array<i32>} : memref<8x224xf32, #tpu.memory_space<vmem>>, vector<4x32xf32>,
    %c5_102 = arith.constant 5 : index
    %c0_103 = arith.constant 0 : index
    %70 = vector.load %arg9[%c5_102, %c0_103] : memref<10x32xf32, #tpu.memory_space<vmem>>, vector<4x32xf32>
    %c0_104 = arith.constant 0 : index
    %c160_105 = arith.constant 160 : index
    %71 = vector.load %arg12[%c0_104, %c160_105] : memref<8x224xf32, #tpu.memory_space<vmem>>, vector<4x32xf32>
    tpu.vector_store %arg12[%c0_104, %c160_105], %70 {strides = array<i32>} : memref<8x224xf32, #tpu.memory_space<vmem>>, vector<4x32xf32>,
    %c6_106 = arith.constant 6 : index
    %c0_107 = arith.constant 0 : index
    %72 = vector.load %arg9[%c6_106, %c0_107] : memref<10x32xf32, #tpu.memory_space<vmem>>, vector<4x32xf32>
    %c0_108 = arith.constant 0 : index
    %c192_109 = arith.constant 192 : index
    %73 = vector.load %arg12[%c0_108, %c192_109] : memref<8x224xf32, #tpu.memory_space<vmem>>, vector<4x32xf32>
    tpu.vector_store %arg12[%c0_108, %c192_109], %72 {strides = array<i32>} : memref<8x224xf32, #tpu.memory_space<vmem>>, vector<4x32xf32>,
    %c1_110 = arith.constant 1 : index
    %c0_111 = arith.constant 0 : index
    %c0_112 = arith.constant 0 : index
    %c0_113 = arith.constant 0 : index
    %74 = vector.load %arg2[%c1_110, %c0_111, %c0_112, %c0_113] : memref<2x4x16x16xf32, #tpu.memory_space<vmem>>, vector<1x4x16x16xf32>
    %75 = vector.shape_cast %74 : vector<1x4x16x16xf32> to vector<4x16x16xf32>
    %cst_114 = arith.constant dense<0xFF800000> : vector<16x16xf32>
    %76 = vector.multi_reduction <maximumf>, %75, %cst_114 [0] : vector<4x16x16xf32> to vector<16x16xf32>
    %cst_115 = arith.constant dense<0.000000e+00> : vector<16x16xf32>
    %77 = vector.multi_reduction <add>, %75, %cst_115 [0] : vector<4x16x16xf32> to vector<16x16xf32>
    %cst_116 = arith.constant 2.500000e-01 : f32
    %78 = vector.broadcast %cst_116 : f32 to vector<16x16xf32>
    %79 = arith.mulf %77, %78 : vector<16x16xf32>
    %cst_117 = arith.constant 0.000000e+00 : f32
    %80 = vector.broadcast %cst_117 : f32 to vector<3x32xf32>
    %c0_118 = arith.constant 0 : index
    %c0_119 = arith.constant 0 : index
    %81 = vector.load %arg7[%c0_118, %c0_119] : memref<22x32xf32, #tpu.memory_space<vmem>>, vector<3x32xf32>
    tpu.vector_store %arg7[%c0_118, %c0_119], %80 {strides = array<i32>} : memref<22x32xf32, #tpu.memory_space<vmem>>, vector<3x32xf32>,
    %cst_120 = arith.constant 0.000000e+00 : f32
    %82 = vector.broadcast %cst_120 : f32 to vector<3x32xf32>
    %c19_121 = arith.constant 19 : index
    %c0_122 = arith.constant 0 : index
    %83 = vector.load %arg7[%c19_121, %c0_122] : memref<22x32xf32, #tpu.memory_space<vmem>>, vector<3x32xf32>
    tpu.vector_store %arg7[%c19_121, %c0_122], %82 {strides = array<i32>} : memref<22x32xf32, #tpu.memory_space<vmem>>, vector<3x32xf32>,
    %c3_123 = arith.constant 3 : index
    %c0_124 = arith.constant 0 : index
    %84 = vector.load %arg7[%c3_123, %c0_124] : memref<22x32xf32, #tpu.memory_space<vmem>>, vector<16x16xf32>
    tpu.vector_store %arg7[%c3_123, %c0_124], %76 {strides = array<i32>} : memref<22x32xf32, #tpu.memory_space<vmem>>, vector<16x16xf32>,
    %c3_125 = arith.constant 3 : index
    %c16_126 = arith.constant 16 : index
    %85 = vector.load %arg7[%c3_125, %c16_126] : memref<22x32xf32, #tpu.memory_space<vmem>>, vector<16x16xf32>
    tpu.vector_store %arg7[%c3_125, %c16_126], %79 {strides = array<i32>} : memref<22x32xf32, #tpu.memory_space<vmem>>, vector<16x16xf32>,
    %c0_127 = arith.constant 0 : index
    %c0_128 = arith.constant 0 : index
    %86 = vector.load %arg7[%c0_127, %c0_128] : memref<22x32xf32, #tpu.memory_space<vmem>>, vector<16x32xf32>
    %c16_129 = arith.constant 16 : index
    %c0_130 = arith.constant 0 : index
    %87 = vector.load %arg10[%c16_129, %c0_130] : memref<32x224xf32, #tpu.memory_space<vmem>>, vector<16x32xf32>
    tpu.vector_store %arg10[%c16_129, %c0_130], %86 {strides = array<i32>} : memref<32x224xf32, #tpu.memory_space<vmem>>, vector<16x32xf32>,
    %c1_131 = arith.constant 1 : index
    %c0_132 = arith.constant 0 : index
    %88 = vector.load %arg7[%c1_131, %c0_132] : memref<22x32xf32, #tpu.memory_space<vmem>>, vector<16x32xf32>
    %c16_133 = arith.constant 16 : index
    %c32_134 = arith.constant 32 : index
    %89 = vector.load %arg10[%c16_133, %c32_134] : memref<32x224xf32, #tpu.memory_space<vmem>>, vector<16x32xf32>
    tpu.vector_store %arg10[%c16_133, %c32_134], %88 {strides = array<i32>} : memref<32x224xf32, #tpu.memory_space<vmem>>, vector<16x32xf32>,
    %c2_135 = arith.constant 2 : index
    %c0_136 = arith.constant 0 : index
    %90 = vector.load %arg7[%c2_135, %c0_136] : memref<22x32xf32, #tpu.memory_space<vmem>>, vector<16x32xf32>
    %c16_137 = arith.constant 16 : index
    %c64_138 = arith.constant 64 : index
    %91 = vector.load %arg10[%c16_137, %c64_138] : memref<32x224xf32, #tpu.memory_space<vmem>>, vector<16x32xf32>
    tpu.vector_store %arg10[%c16_137, %c64_138], %90 {strides = array<i32>} : memref<32x224xf32, #tpu.memory_space<vmem>>, vector<16x32xf32>,
    %c3_139 = arith.constant 3 : index
    %c0_140 = arith.constant 0 : index
    %92 = vector.load %arg7[%c3_139, %c0_140] : memref<22x32xf32, #tpu.memory_space<vmem>>, vector<16x32xf32>
    %c16_141 = arith.constant 16 : index
    %c96_142 = arith.constant 96 : index
    %93 = vector.load %arg10[%c16_141, %c96_142] : memref<32x224xf32, #tpu.memory_space<vmem>>, vector<16x32xf32>
    tpu.vector_store %arg10[%c16_141, %c96_142], %92 {strides = array<i32>} : memref<32x224xf32, #tpu.memory_space<vmem>>, vector<16x32xf32>,
    %c4_143 = arith.constant 4 : index
    %c0_144 = arith.constant 0 : index
    %94 = vector.load %arg7[%c4_143, %c0_144] : memref<22x32xf32, #tpu.memory_space<vmem>>, vector<16x32xf32>
    %c16_145 = arith.constant 16 : index
    %c128_146 = arith.constant 128 : index
    %95 = vector.load %arg10[%c16_145, %c128_146] : memref<32x224xf32, #tpu.memory_space<vmem>>, vector<16x32xf32>
    tpu.vector_store %arg10[%c16_145, %c128_146], %94 {strides = array<i32>} : memref<32x224xf32, #tpu.memory_space<vmem>>, vector<16x32xf32>,
    %c5_147 = arith.constant 5 : index
    %c0_148 = arith.constant 0 : index
    %96 = vector.load %arg7[%c5_147, %c0_148] : memref<22x32xf32, #tpu.memory_space<vmem>>, vector<16x32xf32>
    %c16_149 = arith.constant 16 : index
    %c160_150 = arith.constant 160 : index
    %97 = vector.load %arg10[%c16_149, %c160_150] : memref<32x224xf32, #tpu.memory_space<vmem>>, vector<16x32xf32>
    tpu.vector_store %arg10[%c16_149, %c160_150], %96 {strides = array<i32>} : memref<32x224xf32, #tpu.memory_space<vmem>>, vector<16x32xf32>,
    %c6_151 = arith.constant 6 : index
    %c0_152 = arith.constant 0 : index
    %98 = vector.load %arg7[%c6_151, %c0_152] : memref<22x32xf32, #tpu.memory_space<vmem>>, vector<16x32xf32>
    %c16_153 = arith.constant 16 : index
    %c192_154 = arith.constant 192 : index
    %99 = vector.load %arg10[%c16_153, %c192_154] : memref<32x224xf32, #tpu.memory_space<vmem>>, vector<16x32xf32>
    tpu.vector_store %arg10[%c16_153, %c192_154], %98 {strides = array<i32>} : memref<32x224xf32, #tpu.memory_space<vmem>>, vector<16x32xf32>,
    %cst_155 = arith.constant dense<0xFF800000> : vector<4x16xf32>
    %100 = vector.multi_reduction <maximumf>, %75, %cst_155 [1] : vector<4x16x16xf32> to vector<4x16xf32>
    %cst_156 = arith.constant dense<0.000000e+00> : vector<4x16xf32>
    %101 = vector.multi_reduction <add>, %75, %cst_156 [1] : vector<4x16x16xf32> to vector<4x16xf32>
    %cst_157 = arith.constant 6.250000e-02 : f32
    %102 = vector.broadcast %cst_157 : f32 to vector<4x16xf32>
    %103 = arith.mulf %101, %102 : vector<4x16xf32>
    %cst_158 = arith.constant 0.000000e+00 : f32
    %104 = vector.broadcast %cst_158 : f32 to vector<3x32xf32>
    %c0_159 = arith.constant 0 : index
    %c0_160 = arith.constant 0 : index
    %105 = vector.load %arg8[%c0_159, %c0_160] : memref<10x32xf32, #tpu.memory_space<vmem>>, vector<3x32xf32>
    tpu.vector_store %arg8[%c0_159, %c0_160], %104 {strides = array<i32>} : memref<10x32xf32, #tpu.memory_space<vmem>>, vector<3x32xf32>,
    %cst_161 = arith.constant 0.000000e+00 : f32
    %106 = vector.broadcast %cst_161 : f32 to vector<3x32xf32>
    %c7_162 = arith.constant 7 : index
    %c0_163 = arith.constant 0 : index
    %107 = vector.load %arg8[%c7_162, %c0_163] : memref<10x32xf32, #tpu.memory_space<vmem>>, vector<3x32xf32>
    tpu.vector_store %arg8[%c7_162, %c0_163], %106 {strides = array<i32>} : memref<10x32xf32, #tpu.memory_space<vmem>>, vector<3x32xf32>,
    %c3_164 = arith.constant 3 : index
    %c0_165 = arith.constant 0 : index
    %108 = vector.load %arg8[%c3_164, %c0_165] : memref<10x32xf32, #tpu.memory_space<vmem>>, vector<4x16xf32>
    tpu.vector_store %arg8[%c3_164, %c0_165], %100 {strides = array<i32>} : memref<10x32xf32, #tpu.memory_space<vmem>>, vector<4x16xf32>,
    %c3_166 = arith.constant 3 : index
    %c16_167 = arith.constant 16 : index
    %109 = vector.load %arg8[%c3_166, %c16_167] : memref<10x32xf32, #tpu.memory_space<vmem>>, vector<4x16xf32>
    tpu.vector_store %arg8[%c3_166, %c16_167], %103 {strides = array<i32>} : memref<10x32xf32, #tpu.memory_space<vmem>>, vector<4x16xf32>,
    %c0_168 = arith.constant 0 : index
    %c0_169 = arith.constant 0 : index
    %110 = vector.load %arg8[%c0_168, %c0_169] : memref<10x32xf32, #tpu.memory_space<vmem>>, vector<4x32xf32>
    %c4_170 = arith.constant 4 : index
    %c0_171 = arith.constant 0 : index
    %111 = vector.load %arg11[%c4_170, %c0_171] : memref<8x224xf32, #tpu.memory_space<vmem>>, vector<4x32xf32>
    tpu.vector_store %arg11[%c4_170, %c0_171], %110 {strides = array<i32>} : memref<8x224xf32, #tpu.memory_space<vmem>>, vector<4x32xf32>,
    %c1_172 = arith.constant 1 : index
    %c0_173 = arith.constant 0 : index
    %112 = vector.load %arg8[%c1_172, %c0_173] : memref<10x32xf32, #tpu.memory_space<vmem>>, vector<4x32xf32>
    %c4_174 = arith.constant 4 : index
    %c32_175 = arith.constant 32 : index
    %113 = vector.load %arg11[%c4_174, %c32_175] : memref<8x224xf32, #tpu.memory_space<vmem>>, vector<4x32xf32>
    tpu.vector_store %arg11[%c4_174, %c32_175], %112 {strides = array<i32>} : memref<8x224xf32, #tpu.memory_space<vmem>>, vector<4x32xf32>,
    %c2_176 = arith.constant 2 : index
    %c0_177 = arith.constant 0 : index
    %114 = vector.load %arg8[%c2_176, %c0_177] : memref<10x32xf32, #tpu.memory_space<vmem>>, vector<4x32xf32>
    %c4_178 = arith.constant 4 : index
    %c64_179 = arith.constant 64 : index
    %115 = vector.load %arg11[%c4_178, %c64_179] : memref<8x224xf32, #tpu.memory_space<vmem>>, vector<4x32xf32>
    tpu.vector_store %arg11[%c4_178, %c64_179], %114 {strides = array<i32>} : memref<8x224xf32, #tpu.memory_space<vmem>>, vector<4x32xf32>,
    %c3_180 = arith.constant 3 : index
    %c0_181 = arith.constant 0 : index
    %116 = vector.load %arg8[%c3_180, %c0_181] : memref<10x32xf32, #tpu.memory_space<vmem>>, vector<4x32xf32>
    %c4_182 = arith.constant 4 : index
    %c96_183 = arith.constant 96 : index
    %117 = vector.load %arg11[%c4_182, %c96_183] : memref<8x224xf32, #tpu.memory_space<vmem>>, vector<4x32xf32>
    tpu.vector_store %arg11[%c4_182, %c96_183], %116 {strides = array<i32>} : memref<8x224xf32, #tpu.memory_space<vmem>>, vector<4x32xf32>,
    %c4_184 = arith.constant 4 : index
    %c0_185 = arith.constant 0 : index
    %118 = vector.load %arg8[%c4_184, %c0_185] : memref<10x32xf32, #tpu.memory_space<vmem>>, vector<4x32xf32>
    %c4_186 = arith.constant 4 : index
    %c128_187 = arith.constant 128 : index
    %119 = vector.load %arg11[%c4_186, %c128_187] : memref<8x224xf32, #tpu.memory_space<vmem>>, vector<4x32xf32>
    tpu.vector_store %arg11[%c4_186, %c128_187], %118 {strides = array<i32>} : memref<8x224xf32, #tpu.memory_space<vmem>>, vector<4x32xf32>,
    %c5_188 = arith.constant 5 : index
    %c0_189 = arith.constant 0 : index
    %120 = vector.load %arg8[%c5_188, %c0_189] : memref<10x32xf32, #tpu.memory_space<vmem>>, vector<4x32xf32>
    %c4_190 = arith.constant 4 : index
    %c160_191 = arith.constant 160 : index
    %121 = vector.load %arg11[%c4_190, %c160_191] : memref<8x224xf32, #tpu.memory_space<vmem>>, vector<4x32xf32>
    tpu.vector_store %arg11[%c4_190, %c160_191], %120 {strides = array<i32>} : memref<8x224xf32, #tpu.memory_space<vmem>>, vector<4x32xf32>,
    %c6_192 = arith.constant 6 : index
    %c0_193 = arith.constant 0 : index
    %122 = vector.load %arg8[%c6_192, %c0_193] : memref<10x32xf32, #tpu.memory_space<vmem>>, vector<4x32xf32>
    %c4_194 = arith.constant 4 : index
    %c192_195 = arith.constant 192 : index
    %123 = vector.load %arg11[%c4_194, %c192_195] : memref<8x224xf32, #tpu.memory_space<vmem>>, vector<4x32xf32>
    tpu.vector_store %arg11[%c4_194, %c192_195], %122 {strides = array<i32>} : memref<8x224xf32, #tpu.memory_space<vmem>>, vector<4x32xf32>,
    %cst_196 = arith.constant dense<0xFF800000> : vector<4x16xf32>
    %124 = vector.multi_reduction <maximumf>, %75, %cst_196 [2] : vector<4x16x16xf32> to vector<4x16xf32>
    %cst_197 = arith.constant dense<0.000000e+00> : vector<4x16xf32>
    %125 = vector.multi_reduction <add>, %75, %cst_197 [2] : vector<4x16x16xf32> to vector<4x16xf32>
    %cst_198 = arith.constant 6.250000e-02 : f32
    %126 = vector.broadcast %cst_198 : f32 to vector<4x16xf32>
    %127 = arith.mulf %125, %126 : vector<4x16xf32>
    %cst_199 = arith.constant 0.000000e+00 : f32
    %128 = vector.broadcast %cst_199 : f32 to vector<3x32xf32>
    %c0_200 = arith.constant 0 : index
    %c0_201 = arith.constant 0 : index
    %129 = vector.load %arg9[%c0_200, %c0_201] : memref<10x32xf32, #tpu.memory_space<vmem>>, vector<3x32xf32>
    tpu.vector_store %arg9[%c0_200, %c0_201], %128 {strides = array<i32>} : memref<10x32xf32, #tpu.memory_space<vmem>>, vector<3x32xf32>,
    %cst_202 = arith.constant 0.000000e+00 : f32
    %130 = vector.broadcast %cst_202 : f32 to vector<3x32xf32>
    %c7_203 = arith.constant 7 : index
    %c0_204 = arith.constant 0 : index
    %131 = vector.load %arg9[%c7_203, %c0_204] : memref<10x32xf32, #tpu.memory_space<vmem>>, vector<3x32xf32>
    tpu.vector_store %arg9[%c7_203, %c0_204], %130 {strides = array<i32>} : memref<10x32xf32, #tpu.memory_space<vmem>>, vector<3x32xf32>,
    %c3_205 = arith.constant 3 : index
    %c0_206 = arith.constant 0 : index
    %132 = vector.load %arg9[%c3_205, %c0_206] : memref<10x32xf32, #tpu.memory_space<vmem>>, vector<4x16xf32>
    tpu.vector_store %arg9[%c3_205, %c0_206], %124 {strides = array<i32>} : memref<10x32xf32, #tpu.memory_space<vmem>>, vector<4x16xf32>,
    %c3_207 = arith.constant 3 : index
    %c16_208 = arith.constant 16 : index
    %133 = vector.load %arg9[%c3_207, %c16_208] : memref<10x32xf32, #tpu.memory_space<vmem>>, vector<4x16xf32>
    tpu.vector_store %arg9[%c3_207, %c16_208], %127 {strides = array<i32>} : memref<10x32xf32, #tpu.memory_space<vmem>>, vector<4x16xf32>,
    %c0_209 = arith.constant 0 : index
    %c0_210 = arith.constant 0 : index
    %134 = vector.load %arg9[%c0_209, %c0_210] : memref<10x32xf32, #tpu.memory_space<vmem>>, vector<4x32xf32>
    %c4_211 = arith.constant 4 : index
    %c0_212 = arith.constant 0 : index
    %135 = vector.load %arg12[%c4_211, %c0_212] : memref<8x224xf32, #tpu.memory_space<vmem>>, vector<4x32xf32>
    tpu.vector_store %arg12[%c4_211, %c0_212], %134 {strides = array<i32>} : memref<8x224xf32, #tpu.memory_space<vmem>>, vector<4x32xf32>,
    %c1_213 = arith.constant 1 : index
    %c0_214 = arith.constant 0 : index
    %136 = vector.load %arg9[%c1_213, %c0_214] : memref<10x32xf32, #tpu.memory_space<vmem>>, vector<4x32xf32>
    %c4_215 = arith.constant 4 : index
    %c32_216 = arith.constant 32 : index
    %137 = vector.load %arg12[%c4_215, %c32_216] : memref<8x224xf32, #tpu.memory_space<vmem>>, vector<4x32xf32>
    tpu.vector_store %arg12[%c4_215, %c32_216], %136 {strides = array<i32>} : memref<8x224xf32, #tpu.memory_space<vmem>>, vector<4x32xf32>,
    %c2_217 = arith.constant 2 : index
    %c0_218 = arith.constant 0 : index
    %138 = vector.load %arg9[%c2_217, %c0_218] : memref<10x32xf32, #tpu.memory_space<vmem>>, vector<4x32xf32>
    %c4_219 = arith.constant 4 : index
    %c64_220 = arith.constant 64 : index
    %139 = vector.load %arg12[%c4_219, %c64_220] : memref<8x224xf32, #tpu.memory_space<vmem>>, vector<4x32xf32>
    tpu.vector_store %arg12[%c4_219, %c64_220], %138 {strides = array<i32>} : memref<8x224xf32, #tpu.memory_space<vmem>>, vector<4x32xf32>,
    %c3_221 = arith.constant 3 : index
    %c0_222 = arith.constant 0 : index
    %140 = vector.load %arg9[%c3_221, %c0_222] : memref<10x32xf32, #tpu.memory_space<vmem>>, vector<4x32xf32>
    %c4_223 = arith.constant 4 : index
    %c96_224 = arith.constant 96 : index
    %141 = vector.load %arg12[%c4_223, %c96_224] : memref<8x224xf32, #tpu.memory_space<vmem>>, vector<4x32xf32>
    tpu.vector_store %arg12[%c4_223, %c96_224], %140 {strides = array<i32>} : memref<8x224xf32, #tpu.memory_space<vmem>>, vector<4x32xf32>,
    %c4_225 = arith.constant 4 : index
    %c0_226 = arith.constant 0 : index
    %142 = vector.load %arg9[%c4_225, %c0_226] : memref<10x32xf32, #tpu.memory_space<vmem>>, vector<4x32xf32>
    %c4_227 = arith.constant 4 : index
    %c128_228 = arith.constant 128 : index
    %143 = vector.load %arg12[%c4_227, %c128_228] : memref<8x224xf32, #tpu.memory_space<vmem>>, vector<4x32xf32>
    tpu.vector_store %arg12[%c4_227, %c128_228], %142 {strides = array<i32>} : memref<8x224xf32, #tpu.memory_space<vmem>>, vector<4x32xf32>,
    %c5_229 = arith.constant 5 : index
    %c0_230 = arith.constant 0 : index
    %144 = vector.load %arg9[%c5_229, %c0_230] : memref<10x32xf32, #tpu.memory_space<vmem>>, vector<4x32xf32>
    %c4_231 = arith.constant 4 : index
    %c160_232 = arith.constant 160 : index
    %145 = vector.load %arg12[%c4_231, %c160_232] : memref<8x224xf32, #tpu.memory_space<vmem>>, vector<4x32xf32>
    tpu.vector_store %arg12[%c4_231, %c160_232], %144 {strides = array<i32>} : memref<8x224xf32, #tpu.memory_space<vmem>>, vector<4x32xf32>,
    %c6_233 = arith.constant 6 : index
    %c0_234 = arith.constant 0 : index
    %146 = vector.load %arg9[%c6_233, %c0_234] : memref<10x32xf32, #tpu.memory_space<vmem>>, vector<4x32xf32>
    %c4_235 = arith.constant 4 : index
    %c192_236 = arith.constant 192 : index
    %147 = vector.load %arg12[%c4_235, %c192_236] : memref<8x224xf32, #tpu.memory_space<vmem>>, vector<4x32xf32>
    tpu.vector_store %arg12[%c4_235, %c192_236], %146 {strides = array<i32>} : memref<8x224xf32, #tpu.memory_space<vmem>>, vector<4x32xf32>,
    %c0_237 = arith.constant 0 : index
    %148 = memref.load %arg1[%c0_237] : memref<3xf32, #tpu.memory_space<smem>>
    %c0_238 = arith.constant 0 : index
    %c0_239 = arith.constant 0 : index
    %149 = vector.load %arg10[%c0_238, %c0_239] : memref<32x224xf32, #tpu.memory_space<vmem>>, vector<32x224xf32>
    %150 = arith.truncf %149 : vector<32x224xf32> to vector<32x224xbf16>
    %c0_240 = arith.constant 0 : index
    %c0_241 = arith.constant 0 : index
    %151 = vector.load %arg3[%c0_240, %c0_241] : memref<224x16xbf16, #tpu.memory_space<vmem>>, vector<224x16xbf16>
    %cst_242 = arith.constant dense<0.000000e+00> : vector<32x16xf32>
    %152 = tpu.matmul %150, %151, %cst_242 {dimension_numbers = #tpu.dot_dimension_numbers<[1], [0], [0], [1], [0, 0, 1, 1], [], []>} : vector<32x224xbf16>, vector<224x16xbf16>, vector<32x16xf32> -> vector<32x16xf32>
    %153 = vector.broadcast %148 : f32 to vector<32x16xf32>
    %154 = arith.addf %152, %153 : vector<32x16xf32>
    %155 = arith.negf %154 : vector<32x16xf32>
    %156 = math.exp %155 : vector<32x16xf32>
    %cst_243 = arith.constant 1.000000e+00 : f32
    %157 = vector.broadcast %cst_243 : f32 to vector<32x16xf32>
    %158 = arith.addf %157, %156 : vector<32x16xf32>
    %159 = arith.divf %157, %158 : vector<32x16xf32>
    %c0_244 = arith.constant 0 : index
    %c0_245 = arith.constant 0 : index
    %160 = vector.load %arg13[%c0_244, %c0_245] : memref<32x16xf32, #tpu.memory_space<vmem>>, vector<32x16xf32>
    tpu.vector_store %arg13[%c0_244, %c0_245], %159 {strides = array<i32>} : memref<32x16xf32, #tpu.memory_space<vmem>>, vector<32x16xf32>,
    %c1_246 = arith.constant 1 : index
    %161 = memref.load %arg1[%c1_246] : memref<3xf32, #tpu.memory_space<smem>>
    %c0_247 = arith.constant 0 : index
    %c0_248 = arith.constant 0 : index
    %162 = vector.load %arg11[%c0_247, %c0_248] : memref<8x224xf32, #tpu.memory_space<vmem>>, vector<8x224xf32>
    %163 = arith.truncf %162 : vector<8x224xf32> to vector<8x224xbf16>
    %c0_249 = arith.constant 0 : index
    %c0_250 = arith.constant 0 : index
    %164 = vector.load %arg4[%c0_249, %c0_250] : memref<224x16xbf16, #tpu.memory_space<vmem>>, vector<224x16xbf16>
    %cst_251 = arith.constant dense<0.000000e+00> : vector<8x16xf32>
    %165 = tpu.matmul %163, %164, %cst_251 {dimension_numbers = #tpu.dot_dimension_numbers<[1], [0], [0], [1], [0, 0, 1, 1], [], []>} : vector<8x224xbf16>, vector<224x16xbf16>, vector<8x16xf32> -> vector<8x16xf32>
    %166 = vector.broadcast %161 : f32 to vector<8x16xf32>
    %167 = arith.addf %165, %166 : vector<8x16xf32>
    %168 = arith.negf %167 : vector<8x16xf32>
    %169 = math.exp %168 : vector<8x16xf32>
    %cst_252 = arith.constant 1.000000e+00 : f32
    %170 = vector.broadcast %cst_252 : f32 to vector<8x16xf32>
    %171 = arith.addf %170, %169 : vector<8x16xf32>
    %172 = arith.divf %170, %171 : vector<8x16xf32>
    %c0_253 = arith.constant 0 : index
    %c0_254 = arith.constant 0 : index
    %173 = vector.load %arg14[%c0_253, %c0_254] : memref<8x16xf32, #tpu.memory_space<vmem>>, vector<8x16xf32>
    tpu.vector_store %arg14[%c0_253, %c0_254], %172 {strides = array<i32>} : memref<8x16xf32, #tpu.memory_space<vmem>>, vector<8x16xf32>,
    %c2_255 = arith.constant 2 : index
    %174 = memref.load %arg1[%c2_255] : memref<3xf32, #tpu.memory_space<smem>>
    %c0_256 = arith.constant 0 : index
    %c0_257 = arith.constant 0 : index
    %175 = vector.load %arg12[%c0_256, %c0_257] : memref<8x224xf32, #tpu.memory_space<vmem>>, vector<8x224xf32>
    %176 = arith.truncf %175 : vector<8x224xf32> to vector<8x224xbf16>
    %c0_258 = arith.constant 0 : index
    %c0_259 = arith.constant 0 : index
    %177 = vector.load %arg5[%c0_258, %c0_259] : memref<224x16xbf16, #tpu.memory_space<vmem>>, vector<224x16xbf16>
    %cst_260 = arith.constant dense<0.000000e+00> : vector<8x16xf32>
    %178 = tpu.matmul %176, %177, %cst_260 {dimension_numbers = #tpu.dot_dimension_numbers<[1], [0], [0], [1], [0, 0, 1, 1], [], []>} : vector<8x224xbf16>, vector<224x16xbf16>, vector<8x16xf32> -> vector<8x16xf32>
    %179 = vector.broadcast %174 : f32 to vector<8x16xf32>
    %180 = arith.addf %178, %179 : vector<8x16xf32>
    %181 = arith.negf %180 : vector<8x16xf32>
    %182 = math.exp %181 : vector<8x16xf32>
    %cst_261 = arith.constant 1.000000e+00 : f32
    %183 = vector.broadcast %cst_261 : f32 to vector<8x16xf32>
    %184 = arith.addf %183, %182 : vector<8x16xf32>
    %185 = arith.divf %183, %184 : vector<8x16xf32>
    %c0_262 = arith.constant 0 : index
    %c0_263 = arith.constant 0 : index
    %186 = vector.load %arg15[%c0_262, %c0_263] : memref<8x16xf32, #tpu.memory_space<vmem>>, vector<8x16xf32>
    tpu.vector_store %arg15[%c0_262, %c0_263], %185 {strides = array<i32>} : memref<8x16xf32, #tpu.memory_space<vmem>>, vector<8x16xf32>,
    %c0_264 = arith.constant 0 : index
    %c0_265 = arith.constant 0 : index
    %187 = vector.load %arg13[%c0_264, %c0_265] : memref<32x16xf32, #tpu.memory_space<vmem>>, vector<16x16xf32>
    %c0_266 = arith.constant 0 : index
    %c0_267 = arith.constant 0 : index
    %188 = vector.load %arg14[%c0_266, %c0_267] : memref<8x16xf32, #tpu.memory_space<vmem>>, vector<4x16xf32>
    %c0_268 = arith.constant 0 : index
    %c0_269 = arith.constant 0 : index
    %189 = vector.load %arg15[%c0_268, %c0_269] : memref<8x16xf32, #tpu.memory_space<vmem>>, vector<4x16xf32>
    %190 = vector.shape_cast %187 : vector<16x16xf32> to vector<1x16x16xf32>
    %191 = vector.shape_cast %188 : vector<4x16xf32> to vector<4x1x16xf32>
    %192 = vector.broadcast %190 : vector<1x16x16xf32> to vector<4x16x16xf32>
    %193 = vector.broadcast %191 : vector<4x1x16xf32> to vector<4x16x16xf32>
    %194 = arith.addf %192, %193 : vector<4x16x16xf32>
    %195 = vector.shape_cast %189 : vector<4x16xf32> to vector<4x16x1xf32>
    %196 = vector.broadcast %195 : vector<4x16x1xf32> to vector<4x16x16xf32>
    %197 = arith.addf %194, %196 : vector<4x16x16xf32>
    %cst_270 = arith.constant 0.333333343 : f32
    %198 = vector.broadcast %cst_270 : f32 to vector<4x16x16xf32>
    %199 = arith.mulf %197, %198 : vector<4x16x16xf32>
    %c0_271 = arith.constant 0 : index
    %c0_272 = arith.constant 0 : index
    %c0_273 = arith.constant 0 : index
    %c0_274 = arith.constant 0 : index
    %200 = vector.load %arg2[%c0_271, %c0_272, %c0_273, %c0_274] : memref<2x4x16x16xf32, #tpu.memory_space<vmem>>, vector<1x4x16x16xf32>
    %201 = vector.shape_cast %200 : vector<1x4x16x16xf32> to vector<4x16x16xf32>
    %202 = arith.mulf %201, %199 : vector<4x16x16xf32>
    %c0_275 = arith.constant 0 : index
    %c0_276 = arith.constant 0 : index
    %c0_277 = arith.constant 0 : index
    %c0_278 = arith.constant 0 : index
    %203 = vector.load %arg6[%c0_275, %c0_276, %c0_277, %c0_278] : memref<2x4x16x16xf32, #tpu.memory_space<vmem>>, vector<1x4x16x16xf32>
    %204 = vector.shape_cast %203 : vector<1x4x16x16xf32> to vector<4x16x16xf32>
    %205 = vector.shape_cast %202 : vector<4x16x16xf32> to vector<1x4x16x16xf32>
    tpu.vector_store %arg6[%c0_275, %c0_276, %c0_277, %c0_278], %205 {strides = array<i32>} : memref<2x4x16x16xf32, #tpu.memory_space<vmem>>, vector<1x4x16x16xf32>,
    %c16_279 = arith.constant 16 : index
    %c0_280 = arith.constant 0 : index
    %206 = vector.load %arg13[%c16_279, %c0_280] : memref<32x16xf32, #tpu.memory_space<vmem>>, vector<16x16xf32>
    %c4_281 = arith.constant 4 : index
    %c0_282 = arith.constant 0 : index
    %207 = vector.load %arg14[%c4_281, %c0_282] : memref<8x16xf32, #tpu.memory_space<vmem>>, vector<4x16xf32>
    %c4_283 = arith.constant 4 : index
    %c0_284 = arith.constant 0 : index
    %208 = vector.load %arg15[%c4_283, %c0_284] : memref<8x16xf32, #tpu.memory_space<vmem>>, vector<4x16xf32>
    %209 = vector.shape_cast %206 : vector<16x16xf32> to vector<1x16x16xf32>
    %210 = vector.shape_cast %207 : vector<4x16xf32> to vector<4x1x16xf32>
    %211 = vector.broadcast %209 : vector<1x16x16xf32> to vector<4x16x16xf32>
    %212 = vector.broadcast %210 : vector<4x1x16xf32> to vector<4x16x16xf32>
    %213 = arith.addf %211, %212 : vector<4x16x16xf32>
    %214 = vector.shape_cast %208 : vector<4x16xf32> to vector<4x16x1xf32>
    %215 = vector.broadcast %214 : vector<4x16x1xf32> to vector<4x16x16xf32>
    %216 = arith.addf %213, %215 : vector<4x16x16xf32>
    %cst_285 = arith.constant 0.333333343 : f32
    %217 = vector.broadcast %cst_285 : f32 to vector<4x16x16xf32>
    %218 = arith.mulf %216, %217 : vector<4x16x16xf32>
    %c1_286 = arith.constant 1 : index
    %c0_287 = arith.constant 0 : index
    %c0_288 = arith.constant 0 : index
    %c0_289 = arith.constant 0 : index
    %219 = vector.load %arg2[%c1_286, %c0_287, %c0_288, %c0_289] : memref<2x4x16x16xf32, #tpu.memory_space<vmem>>, vector<1x4x16x16xf32>
    %220 = vector.shape_cast %219 : vector<1x4x16x16xf32> to vector<4x16x16xf32>
    %221 = arith.mulf %220, %218 : vector<4x16x16xf32>
    %c1_290 = arith.constant 1 : index
    %c0_291 = arith.constant 0 : index
    %c0_292 = arith.constant 0 : index
    %c0_293 = arith.constant 0 : index
    %222 = vector.load %arg6[%c1_290, %c0_291, %c0_292, %c0_293] : memref<2x4x16x16xf32, #tpu.memory_space<vmem>>, vector<1x4x16x16xf32>
    %223 = vector.shape_cast %222 : vector<1x4x16x16xf32> to vector<4x16x16xf32>
    %224 = vector.shape_cast %221 : vector<4x16x16xf32> to vector<1x4x16x16xf32>
    tpu.vector_store %arg6[%c1_290, %c0_291, %c0_292, %c0_293], %224 {strides = array<i32>} : memref<2x4x16x16xf32, #tpu.memory_space<vmem>>, vector<1x4x16x16xf32>,
    return
  }
  func.func @transform_0(%arg0: i32) -> i32 {
    %c0_i32 = arith.constant 0 : i32
    %c0_i32_0 = arith.constant 0 : i32
    return %c0_i32 : i32
  }
  func.func @transform_1(%arg0: i32) -> (i32, i32, i32, i32) {
    %c0_i32 = arith.constant 0 : i32
    %c0_i32_0 = arith.constant 0 : i32
    %c0_i32_1 = arith.constant 0 : i32
    %c0_i32_2 = arith.constant 0 : i32
    return %arg0, %c0_i32, %c0_i32_0, %c0_i32_1 : i32, i32, i32, i32
  }
  func.func @transform_2(%arg0: i32) -> (i32, i32) {
    %c0_i32 = arith.constant 0 : i32
    %c0_i32_0 = arith.constant 0 : i32
    %c0_i32_1 = arith.constant 0 : i32
    return %c0_i32, %c0_i32_0 : i32, i32
  }
  func.func @transform_3(%arg0: i32) -> (i32, i32) {
    %c0_i32 = arith.constant 0 : i32
    %c0_i32_0 = arith.constant 0 : i32
    %c0_i32_1 = arith.constant 0 : i32
    return %c0_i32, %c0_i32_0 : i32, i32
  }
  func.func @transform_4(%arg0: i32) -> (i32, i32) {
    %c0_i32 = arith.constant 0 : i32
    %c0_i32_0 = arith.constant 0 : i32
    %c0_i32_1 = arith.constant 0 : i32
    return %c0_i32, %c0_i32_0 : i32, i32
  }
  func.func @transform_5(%arg0: i32) -> (i32, i32, i32, i32) {
    %c0_i32 = arith.constant 0 : i32
    %c0_i32_0 = arith.constant 0 : i32
    %c0_i32_1 = arith.constant 0 : i32
    %c0_i32_2 = arith.constant 0 : i32
    return %arg0, %c0_i32, %c0_i32_0, %c0_i32_1 : i32, i32, i32, i32
  }
}

</mosaic_0001>

<llo_original>
// kernel: mvdfe_forward.1
$region0: #{mvdfe_forward.1}
  #allocation0 [shape = 'u32[]', space=smem, size = 0x4, offset = 0x4, fixed_abs, tag = 'smem constant byte address 0x4 - core index']
  #allocation1 [shape = 'u32[144,128]{1,0:T(1,128)}', space=vmem, size = 0x12000, scoped, tag = 'internal scratch']
  #allocation2 [shape = 'f32[22,32]{1,0:T(8,128)}', space=vmem, size = 0x3000, scoped, tag = 'scratch operand']
  #allocation3 [shape = 'f32[10,32]{1,0:T(8,128)}', space=vmem, size = 0x2000, scoped, tag = 'scratch operand']
  #allocation4 [shape = 'f32[10,32]{1,0:T(8,128)}', space=vmem, size = 0x2000, scoped, tag = 'scratch operand']
  #allocation5 [shape = 'f32[32,224]{1,0:T(8,128)}', space=vmem, size = 0x8000, scoped, tag = 'scratch operand']
  #allocation6 [shape = 'f32[8,224]{1,0:T(8,128)}', space=vmem, size = 0x2000, scoped, tag = 'scratch operand']
  #allocation7 [shape = 'f32[8,224]{1,0:T(8,128)}', space=vmem, size = 0x2000, scoped, tag = 'scratch operand']
  #allocation8 [shape = 'f32[32,16]{1,0:T(8,128)}', space=vmem, size = 0x4000, scoped, tag = 'scratch operand']
  #allocation9 [shape = 'f32[8,16]{1,0:T(8,128)}', space=vmem, size = 0x1000, scoped, tag = 'scratch operand']
  #allocation10 [shape = 'f32[8,16]{1,0:T(8,128)}', space=vmem, size = 0x1000, scoped, tag = 'scratch operand']
  %s0 = inlined_call_operand.hbm [shape: f32[3], index: 0, kind: input, shape index: {}]
  %s1 = inlined_call_operand.hbm [shape: f32[2,4,16,16], index: 1, kind: input, shape index: {}]
  %s2 = inlined_call_operand.hbm [shape: bf16[224,16], index: 2, kind: input, shape index: {}]
  %s3 = inlined_call_operand.hbm [shape: bf16[224,16], index: 3, kind: input, shape index: {}]
  %s4 = inlined_call_operand.hbm [shape: bf16[224,16], index: 4, kind: input, shape index: {}]
  %s5 = inlined_call_operand.hbm [shape: f32[2,4,16,16], index: 5, kind: output, shape index: {}]
  %s6 = sld [smem:[#allocation0]]
  $region50: #{mvdfe_forward.1} parent=0
    _
  %s8 = ssub.s32 1, %s6
  %s9 = scalar_select 0, %s8, %s6
  $region1: #{mvdfe_forward.1} parent=0
    #allocation11 [shape = 'u8[512]{0}', space=smem, size = 0x200, scoped, tag = 'input window, operand 0, single buffered']
    #allocation12 [shape = 's32[1]{0}', space=sflag, size = 0x4, scoped, tag = 'scoped memory for mvdfe_forward.1']
    #allocation13 [shape = 's32[1]{0}', space=sflag, size = 0x4, scoped, tag = 'scoped memory for mvdfe_forward.1']
    #allocation14 [shape = 's32[1]{0}', space=sflag, size = 0x4, scoped, tag = 'scoped memory for mvdfe_forward.1']
    #allocation15 [shape = 'u8[65536]{0}', space=vmem, size = 0x10000, scoped, tag = 'input window, operand 1, single buffered']
    #allocation16 [shape = 'u8[57344]{0}', space=vmem, size = 0xe000, scoped, tag = 'input window, operand 2, single buffered']
    #allocation17 [shape = 's32[1]{0}', space=sflag, size = 0x4, scoped, tag = 'scoped memory for mvdfe_forward.1']
    #allocation18 [shape = 'u8[57344]{0}', space=vmem, size = 0xe000, scoped, tag = 'input window, operand 3, single buffered']
    #allocation19 [shape = 'u8[57344]{0}', space=vmem, size = 0xe000, scoped, tag = 'input window, operand 4, single buffered']
    #allocation20 [shape = 's32[1]{0}', space=sflag, size = 0x4, scoped, tag = 'scoped memory for mvdfe_forward.1']
    #allocation21 [shape = 'u8[65536]{0}', space=vmem, size = 0x10000, scoped, tag = 'output window, operand 0, single buffered']
    %10 = vsyncpa [#allocation14], 0
    %11 = vsyncpa [#allocation12], 0
    %12 = vsyncpa [#allocation17], 0
    %13 = vsyncpa [#allocation20], 0
    %14 = vsyncpa [#allocation13], 0
    // Predicated region
    $region2: #{mvdfe_forward.1} parent=1 // pred_check
      _
    $region3: #{mvdfe_forward.1} parent=1 // pred_check_branch
      %16 = sbr.rel (0) target = $region5
    $region4: #{mvdfe_forward.1} parent=1 // pred_region
      %s18 = ssub.s32 16, 16
      %19 = vsyncadd [#allocation14], %s18
      %22 = dma.hbm_to_smem %s0, 16, [#allocation11], [#allocation14]
    $region5: #{mvdfe_forward.1} parent=1 // pred_fallthru
      _
    // Predicated region
    $region6: #{mvdfe_forward.1} parent=1 // pred_check
      _
    $region7: #{mvdfe_forward.1} parent=1 // pred_check_branch
      %24 = sbr.rel (0) target = $region9
    $region8: #{mvdfe_forward.1} parent=1 // pred_region
      %s26 = ssub.s32 2048, 2048
      %27 = vsyncadd [#allocation12], %s26
      %s28 = sshll.u32 [#allocation15], 4
      %s29 = int_to_ptr.vmem [resolvable:$true] %s28
      %34 = dma.hbm_to_vmem [thread:$0]  %s1, 2048, %s29, [#allocation12], 128, 128, 8
    $region9: #{mvdfe_forward.1} parent=1 // pred_fallthru
      _
    // Predicated region
    $region10: #{mvdfe_forward.1} parent=1 // pred_check
      _
    $region11: #{mvdfe_forward.1} parent=1 // pred_check_branch
      %36 = sbr.rel (0) target = $region13
    $region12: #{mvdfe_forward.1} parent=1 // pred_region
      %s38 = ssub.s32 1792, 1792
      %39 = vsyncadd [#allocation17], %s38
      %s40 = sshll.u32 [#allocation16], 4
      %s41 = int_to_ptr.vmem [resolvable:$true] %s40
      %46 = dma.hbm_to_vmem [thread:$0]  %s2, 1792, %s41, [#allocation17], 64, 64, 4
    $region13: #{mvdfe_forward.1} parent=1 // pred_fallthru
      _
    // Predicated region
    $region14: #{mvdfe_forward.1} parent=1 // pred_check
      _
    $region15: #{mvdfe_forward.1} parent=1 // pred_check_branch
      %48 = sbr.rel (0) target = $region17
    $region16: #{mvdfe_forward.1} parent=1 // pred_region
      %s50 = ssub.s32 1792, 1792
      %51 = vsyncadd [#allocation17], %s50
      %s52 = sshll.u32 [#allocation18], 4
      %s53 = int_to_ptr.vmem [resolvable:$true] %s52
      %58 = dma.hbm_to_vmem [thread:$0]  %s3, 1792, %s53, [#allocation17], 64, 64, 4
    $region17: #{mvdfe_forward.1} parent=1 // pred_fallthru
      _
    // Predicated region
    $region18: #{mvdfe_forward.1} parent=1 // pred_check
      _
    $region19: #{mvdfe_forward.1} parent=1 // pred_check_branch
      %60 = sbr.rel (0) target = $region21
    $region20: #{mvdfe_forward.1} parent=1 // pred_region
      %s62 = ssub.s32 1792, 1792
      %63 = vsyncadd [#allocation20], %s62
      %s64 = sshll.u32 [#allocation19], 4
      %s65 = int_to_ptr.vmem [resolvable:$true] %s64
      %70 = dma.hbm_to_vmem [thread:$0]  %s4, 1792, %s65, [#allocation20], 64, 64, 4
    $region21: #{mvdfe_forward.1} parent=1 // pred_fallthru
      _
    // Predicated region
    $region22: #{mvdfe_forward.1} parent=1 // pred_check
      _
    $region23: #{mvdfe_forward.1} parent=1 // pred_check_branch
      %72 = sbr.rel (0) target = $region25
    $region24: #{mvdfe_forward.1} parent=1 // pred_region
      %73 = dma.done [#allocation14], 16
    $region25: #{mvdfe_forward.1} parent=1 // pred_fallthru
      _
    // Predicated region
    $region26: #{mvdfe_forward.1} parent=1 // pred_check
      _
    $region27: #{mvdfe_forward.1} parent=1 // pred_check_branch
      %75 = sbr.rel (0) target = $region29
    $region28: #{mvdfe_forward.1} parent=1 // pred_region
      %76 = dma.done [#allocation12], 2048
    $region29: #{mvdfe_forward.1} parent=1 // pred_fallthru
      _
    // Predicated region
    $region30: #{mvdfe_forward.1} parent=1 // pred_check
      _
    $region31: #{mvdfe_forward.1} parent=1 // pred_check_branch
      %78 = sbr.rel (0) target = $region33
    $region32: #{mvdfe_forward.1} parent=1 // pred_region
      %79 = dma.done [#allocation17], 1792
    $region33: #{mvdfe_forward.1} parent=1 // pred_fallthru
      _
    // Predicated region
    $region34: #{mvdfe_forward.1} parent=1 // pred_check
      _
    $region35: #{mvdfe_forward.1} parent=1 // pred_check_branch
      %81 = sbr.rel (0) target = $region37
    $region36: #{mvdfe_forward.1} parent=1 // pred_region
      %82 = dma.done [#allocation17], 1792
    $region37: #{mvdfe_forward.1} parent=1 // pred_fallthru
      _
    // Predicated region
    $region38: #{mvdfe_forward.1} parent=1 // pred_check
      _
    $region39: #{mvdfe_forward.1} parent=1 // pred_check_branch
      %84 = sbr.rel (0) target = $region41
    $region40: #{mvdfe_forward.1} parent=1 // pred_region
      %85 = dma.done [#allocation20], 1792
    $region41: #{mvdfe_forward.1} parent=1 // pred_fallthru
      _
    %86 = sfence
    %v88 = vld [vmem:[#allocation15] sm:$0xff]
    %v89 = vld [vmem:[#allocation15 + $0x8] sm:$0xff]
    %v90 = vld [vmem:[#allocation15 + $0x10] sm:$0xff]
    %v91 = vld [vmem:[#allocation15 + $0x18] sm:$0xff]
    %v92 = vld [vmem:[#allocation15 + $0x20] sm:$0xff]
    %v93 = vld [vmem:[#allocation15 + $0x28] sm:$0xff]
    %v94 = vld [vmem:[#allocation15 + $0x30] sm:$0xff]
    %v95 = vld [vmem:[#allocation15 + $0x38] sm:$0xff]
    %vm96 = vcmask 130048
    %v97 = vsel %vm96, %v88, -inf
    %v98 = vsel %vm96, %v90, -inf
    %v99 = vsel %vm96, %v92, -inf
    %v100 = vmax.f32 %v97, %v99
    %v101 = vsel %vm96, %v94, -inf
    %v102 = vmax.f32 %v98, %v101
    %v103 = vmax.f32 %v100, %v102
    %v104 = vsel %vm96, %v89, -inf
    %v105 = vsel %vm96, %v91, -inf
    %v106 = vsel %vm96, %v93, -inf
    %v107 = vmax.f32 %v104, %v106
    %v108 = vsel %vm96, %v95, -inf
    %v109 = vmax.f32 %v105, %v108
    %v110 = vmax.f32 %v107, %v109
    %v111 = vsel %vm96, %v88, 0.0
    %v112 = vsel %vm96, %v90, 0.0
    %v113 = vadd.f32 %v111, %v112
    %v114 = vsel %vm96, %v92, 0.0
    %v115 = vadd.f32 %v113, %v114
    %v116 = vsel %vm96, %v94, 0.0
    %v117 = vadd.f32 %v115, %v116
    %v118 = vsel %vm96, %v89, 0.0
    %v119 = vsel %vm96, %v91, 0.0
    %v120 = vadd.f32 %v118, %v119
    %v121 = vsel %vm96, %v93, 0.0
    %v122 = vadd.f32 %v120, %v121
    %v123 = vsel %vm96, %v95, 0.0
    %v124 = vadd.f32 %v122, %v123
    %v125 = vmul.f32 %v117, 0.25
    %v126 = vmul.f32 %v124, 0.25
    %vm127 = vcmask 256000
    %128 = vst.msk [vmem:[#allocation2] sm:$0x7] %vm127, 0.0
    %129 = vst.msk [vmem:[#allocation2 + $0x13] sm:$0x7] %vm127, 0.0
    %130 = vst.msk [vmem:[#allocation2 + $0x3] sm:$0xff] %vm96, %v103
    %131 = vst.msk [vmem:[#allocation2 + $0xb] sm:$0xff] %vm96, %v110
    %134 = vrot.lane.b32.xlu0 %v125, 16
    %v135 = vpop.permute.xlu0 %134
    %136 = vrot.lane.b32.xlu0 %v126, 16
    %v137 = vpop.permute.xlu0 %136
    %vm140 = vcmask 261248
    %141 = vst.msk [vmem:[#allocation2 + $0x3] sm:$0xff] %vm140, %v135
    %142 = vst.msk [vmem:[#allocation2 + $0xb] sm:$0xff] %vm140, %v137
    %v143 = vld [vmem:[#allocation2] sm:$0xff]
    %v144 = vld [vmem:[#allocation2 + $0x8] sm:$0xff]
    %vm145 = vcmask 261120
    %146 = vst.msk [vmem:[#allocation5] sm:$0xff] %vm145, %v143
    %147 = vst.msk [vmem:[#allocation5 + $0x10] sm:$0xff] %vm145, %v144
    %v148 = vld [vmem:[#allocation2 + $0x1] sm:$0xff]
    %v149 = vld [vmem:[#allocation2 + $0x9] sm:$0xff]
    %152 = vrot.lane.b32.xlu0 %v148, 32
    %v153 = vpop.permute.xlu0 %152
    %154 = vrot.lane.b32.xlu0 %v149, 32
    %v155 = vpop.permute.xlu0 %154
    %vm158 = vcmask 523520
    %159 = vst.msk [vmem:[#allocation5] sm:$0xff] %vm158, %v153
    %160 = vst.msk [vmem:[#allocation5 + $0x10] sm:$0xff] %vm158, %v155
    %v161 = vld [vmem:[#allocation2 + $0x2] sm:$0xff]
    %v162 = vld [vmem:[#allocation2 + $0xa] sm:$0xff]
    %165 = vrot.lane.b32.xlu0 %v161, 64
    %v166 = vpop.permute.xlu0 %165
    %167 = vrot.lane.b32.xlu0 %v162, 64
    %v168 = vpop.permute.xlu0 %167
    %vm171 = vcmask 785920
    %172 = vst.msk [vmem:[#allocation5] sm:$0xff] %vm171, %v166
    %173 = vst.msk [vmem:[#allocation5 + $0x10] sm:$0xff] %vm171, %v168
    %v174 = vld [vmem:[#allocation2 + $0x3] sm:$0xff]
    %v175 = vld [vmem:[#allocation2 + $0xb] sm:$0xff]
    %178 = vrot.lane.b32.xlu0 %v174, 96
    %v179 = vpop.permute.xlu0 %178
    %180 = vrot.lane.b32.xlu0 %v175, 96
    %v181 = vpop.permute.xlu0 %180
    %vm184 = vcmask 1048320
    %185 = vst.msk [vmem:[#allocation5] sm:$0xff] %vm184, %v179
    %186 = vst.msk [vmem:[#allocation5 + $0x10] sm:$0xff] %vm184, %v181
    %v187 = vld [vmem:[#allocation2 + $0x4] sm:$0xff]
    %v188 = vld [vmem:[#allocation2 + $0xc] sm:$0xff]
    %189 = vst.msk [vmem:[#allocation5 + $0x8] sm:$0xff] %vm145, %v187
    %190 = vst.msk [vmem:[#allocation5 + $0x18] sm:$0xff] %vm145, %v188
    %v191 = vld [vmem:[#allocation2 + $0x5] sm:$0xff]
    %v192 = vld [vmem:[#allocation2 + $0xd] sm:$0xff]
    %195 = vrot.lane.b32.xlu0 %v191, 32
    %v196 = vpop.permute.xlu0 %195
    %197 = vrot.lane.b32.xlu0 %v192, 32
    %v198 = vpop.permute.xlu0 %197
    %201 = vst.msk [vmem:[#allocation5 + $0x8] sm:$0xff] %vm158, %v196
    %202 = vst.msk [vmem:[#allocation5 + $0x18] sm:$0xff] %vm158, %v198
    %v203 = vld [vmem:[#allocation2 + $0x6] sm:$0xff]
    %v204 = vld [vmem:[#allocation2 + $0xe] sm:$0xff]
    %207 = vrot.lane.b32.xlu0 %v203, 64
    %v208 = vpop.permute.xlu0 %207
    %209 = vrot.lane.b32.xlu0 %v204, 64
    %v210 = vpop.permute.xlu0 %209
    %213 = vst.msk [vmem:[#allocation5 + $0x8] sm:$0xff] %vm171, %v208
    %214 = vst.msk [vmem:[#allocation5 + $0x18] sm:$0xff] %vm171, %v210
    %v215 = vmax.f32 %v97, %v104
    %v216 = vrot.slane %v215, 4
    %v217 = vmax.f32 %v215, %v216
    %v218 = vrot.slane %v217, 2
    %v219 = vmax.f32 %v217, %v218
    %v220 = vrot.slane %v219, 1
    %v221 = vmax.f32 %v219, %v220
    %v222 = vmax.f32 %v98, %v105
    %v223 = vrot.slane %v222, 4
    %v224 = vmax.f32 %v222, %v223
    %v225 = vrot.slane %v224, 2
    %v226 = vmax.f32 %v224, %v225
    %v227 = vrot.slane %v226, 1
    %v228 = vmax.f32 %v226, %v227
    %v229 = vmax.f32 %v99, %v106
    %v230 = vrot.slane %v229, 4
    %v231 = vmax.f32 %v229, %v230
    %v232 = vrot.slane %v231, 2
    %v233 = vmax.f32 %v231, %v232
    %v234 = vrot.slane %v233, 1
    %v235 = vmax.f32 %v233, %v234
    %v236 = vmax.f32 %v101, %v108
    %v237 = vrot.slane %v236, 4
    %v238 = vmax.f32 %v236, %v237
    %v239 = vrot.slane %v238, 2
    %v240 = vmax.f32 %v238, %v239
    %v241 = vrot.slane %v240, 1
    %v242 = vmax.f32 %v240, %v241
    %v243 = vadd.f32 %v111, %v118
    %v244 = vrot.slane %v243, 4
    %v245 = vadd.f32 %v243, %v244
    %v246 = vrot.slane %v245, 2
    %v247 = vadd.f32 %v245, %v246
    %v248 = vrot.slane %v247, 1
    %v249 = vadd.f32 %v247, %v248
    %v250 = vadd.f32 %v112, %v119
    %v251 = vrot.slane %v250, 4
    %v252 = vadd.f32 %v250, %v251
    %v253 = vrot.slane %v252, 2
    %v254 = vadd.f32 %v252, %v253
    %v255 = vrot.slane %v254, 1
    %v256 = vadd.f32 %v254, %v255
    %v257 = vadd.f32 %v114, %v121
    %v258 = vrot.slane %v257, 4
    %v259 = vadd.f32 %v257, %v258
    %v260 = vrot.slane %v259, 2
    %v261 = vadd.f32 %v259, %v260
    %v262 = vrot.slane %v261, 1
    %v263 = vadd.f32 %v261, %v262
    %v264 = vadd.f32 %v116, %v123
    %v265 = vrot.slane %v264, 4
    %v266 = vadd.f32 %v264, %v265
    %v267 = vrot.slane %v266, 2
    %v268 = vadd.f32 %v266, %v267
    %v269 = vrot.slane %v268, 1
    %v270 = vadd.f32 %v268, %v269
    %v271 = vmul.f32 %v249, 0.0625
    %v272 = vmul.f32 %v256, 0.0625
    %v273 = vmul.f32 %v263, 0.0625
    %v274 = vmul.f32 %v270, 0.0625
    %275 = vst.msk [vmem:[#allocation3] sm:$0x7] %vm127, 0.0
    %276 = vst.msk [vmem:[#allocation3 + $0x7] sm:$0x7] %vm127, 0.0
    %vm281 = vcmask 1041409
    %v282 = vsel %vm281, %v228, %v221
    %vm283 = vcmask 1042434
    %v284 = vsel %vm283, %v235, %v282
    %vm285 = vcmask 1043459
    %v286 = vsel %vm285, %v242, %v284
    %vm288 = vcmask 125952
    %289 = vst.msk [vmem:[#allocation3 + $0x3] sm:$0xf] %vm288, %v286
    %v294 = vsel %vm281, %v272, %v271
    %v295 = vsel %vm283, %v273, %v294
    %v296 = vsel %vm285, %v274, %v295
    %297 = vrot.lane.b32.xlu0 %v296, 16
    %v298 = vpop.permute.xlu0 %297
    %vm300 = vcmask 257152
    %301 = vst.msk [vmem:[#allocation3 + $0x3] sm:$0xf] %vm300, %v298
    %v302 = vld [vmem:[#allocation3] sm:$0xf]
    %vm303 = vcmask 257024
    %304 = vst.msk [vmem:[#allocation6] sm:$0xf] %vm303, %v302
    %v305 = vld [vmem:[#allocation3 + $0x1] sm:$0xf]
    %307 = vrot.lane.b32.xlu0 %v305, 32
    %v308 = vpop.permute.xlu0 %307
    %vm310 = vcmask 519424
    %311 = vst.msk [vmem:[#allocation6] sm:$0xf] %vm310, %v308
    %v312 = vld [vmem:[#allocation3 + $0x2] sm:$0xf]
    %314 = vrot.lane.b32.xlu0 %v312, 64
    %v315 = vpop.permute.xlu0 %314
    %vm317 = vcmask 781824
    %318 = vst.msk [vmem:[#allocation6] sm:$0xf] %vm317, %v315
    %v319 = vld [vmem:[#allocation3 + $0x3] sm:$0xf]
    %321 = vrot.lane.b32.xlu0 %v319, 96
    %v322 = vpop.permute.xlu0 %321
    %vm324 = vcmask 1044224
    %325 = vst.msk [vmem:[#allocation6] sm:$0xf] %vm324, %v322
    %v326 = vld [vmem:[#allocation3 + $0x4] sm:$0xf]
    %327 = vst.msk [vmem:[#allocation6 + $0x8] sm:$0xf] %vm303, %v326
    %v328 = vld [vmem:[#allocation3 + $0x5] sm:$0xf]
    %330 = vrot.lane.b32.xlu0 %v328, 32
    %v331 = vpop.permute.xlu0 %330
    %333 = vst.msk [vmem:[#allocation6 + $0x8] sm:$0xf] %vm310, %v331
    %v334 = vld [vmem:[#allocation3 + $0x6] sm:$0xf]
    %336 = vrot.lane.b32.xlu0 %v334, 64
    %v337 = vpop.permute.xlu0 %336
    %339 = vst.msk [vmem:[#allocation6 + $0x8] sm:$0xf] %vm317, %v337
    %340 = vmax.xlane.f32.xlu0 %v97
    %v341 = vpop.xlane.xlu0 %340
    %342 = vmax.xlane.f32.xlu0 %v104
    %v343 = vpop.xlane.xlu0 %342
    %344 = vmax.xlane.f32.xlu0 %v98
    %v345 = vpop.xlane.xlu0 %344
    %346 = vmax.xlane.f32.xlu0 %v105
    %v347 = vpop.xlane.xlu0 %346
    %348 = vmax.xlane.f32.xlu0 %v99
    %v349 = vpop.xlane.xlu0 %348
    %350 = vmax.xlane.f32.xlu0 %v106
    %v351 = vpop.xlane.xlu0 %350
    %352 = vmax.xlane.f32.xlu0 %v101
    %v353 = vpop.xlane.xlu0 %352
    %354 = vmax.xlane.f32.xlu0 %v108
    %v355 = vpop.xlane.xlu0 %354
    %356 = vadd.xlane.f32.xlu0 %v111
    %v357 = vpop.xlane.xlu0 %356
    %358 = vadd.xlane.f32.xlu0 %v118
    %v359 = vpop.xlane.xlu0 %358
    %360 = vadd.xlane.f32.xlu0 %v112
    %v361 = vpop.xlane.xlu0 %360
    %362 = vadd.xlane.f32.xlu0 %v119
    %v363 = vpop.xlane.xlu0 %362
    %364 = vadd.xlane.f32.xlu0 %v114
    %v365 = vpop.xlane.xlu0 %364
    %366 = vadd.xlane.f32.xlu0 %v121
    %v367 = vpop.xlane.xlu0 %366
    %368 = vadd.xlane.f32.xlu0 %v116
    %v369 = vpop.xlane.xlu0 %368
    %370 = vadd.xlane.f32.xlu0 %v123
    %v371 = vpop.xlane.xlu0 %370
    %v372 = vmul.f32 %v357, 0.0625
    %v373 = vmul.f32 %v359, 0.0625
    %v374 = vmul.f32 %v361, 0.0625
    %v375 = vmul.f32 %v363, 0.0625
    %v376 = vmul.f32 %v365, 0.0625
    %v377 = vmul.f32 %v367, 0.0625
    %v378 = vmul.f32 %v369, 0.0625
    %v379 = vmul.f32 %v371, 0.0625
    %380 = vst.msk [vmem:[#allocation4] sm:$0x7] %vm127, 0.0
    %381 = vst.msk [vmem:[#allocation4 + $0x7] sm:$0x7] %vm127, 0.0
    %v390 = vlaneseq
    %v391 = vand.u32 %v390, 127
    %v392 = vlaneseq
    %v393 = vshrl.u32 %v392, 7
    %v394 = vsub.s32 %v391, %v393
    %v395 = vrot.slane %v341, %v394
    %v396 = vadd.s32 %v391, 4294967288
    %v397 = vlaneseq
    %v398 = vshrl.u32 %v397, 7
    %v399 = vsub.s32 %v396, %v398
    %v400 = vrot.slane %v343, %v399
    %vm401 = vcmask 130112
    %v402 = vsel %vm401, %v400, %v395
    %v403 = vlaneseq
    %v404 = vshrl.u32 %v403, 7
    %v405 = vsub.s32 %v391, %v404
    %v406 = vrot.slane %v345, %v405
    %v407 = vlaneseq
    %v408 = vshrl.u32 %v407, 7
    %v409 = vsub.s32 %v396, %v408
    %v410 = vrot.slane %v347, %v409
    %v411 = vsel %vm401, %v410, %v406
    %v412 = vlaneseq
    %v413 = vshrl.u32 %v412, 7
    %v414 = vsub.s32 %v391, %v413
    %v415 = vrot.slane %v349, %v414
    %v416 = vlaneseq
    %v417 = vshrl.u32 %v416, 7
    %v418 = vsub.s32 %v396, %v417
    %v419 = vrot.slane %v351, %v418
    %v420 = vsel %vm401, %v419, %v415
    %v421 = vlaneseq
    %v422 = vshrl.u32 %v421, 7
    %v423 = vsub.s32 %v391, %v422
    %v424 = vrot.slane %v353, %v423
    %v425 = vlaneseq
    %v426 = vshrl.u32 %v425, 7
    %v427 = vsub.s32 %v396, %v426
    %v428 = vrot.slane %v355, %v427
    %v429 = vsel %vm401, %v428, %v424
    %v430 = vsel %vm281, %v411, %v402
    %v431 = vsel %vm283, %v420, %v430
    %v432 = vsel %vm285, %v429, %v431
    %434 = vst.msk [vmem:[#allocation4 + $0x3] sm:$0xf] %vm288, %v432
    %v443 = vadd.s32 %v391, 4294967280
    %v444 = vlaneseq
    %v445 = vshrl.u32 %v444, 7
    %v446 = vsub.s32 %v443, %v445
    %v447 = vrot.slane %v372, %v446
    %v448 = vadd.s32 %v391, 4294967272
    %v449 = vlaneseq
    %v450 = vshrl.u32 %v449, 7
    %v451 = vsub.s32 %v448, %v450
    %v452 = vrot.slane %v373, %v451
    %vm453 = vcmask 261312
    %v454 = vsel %vm453, %v452, %v447
    %v455 = vlaneseq
    %v456 = vshrl.u32 %v455, 7
    %v457 = vsub.s32 %v443, %v456
    %v458 = vrot.slane %v374, %v457
    %v459 = vlaneseq
    %v460 = vshrl.u32 %v459, 7
    %v461 = vsub.s32 %v448, %v460
    %v462 = vrot.slane %v375, %v461
    %v463 = vsel %vm453, %v462, %v458
    %v464 = vlaneseq
    %v465 = vshrl.u32 %v464, 7
    %v466 = vsub.s32 %v443, %v465
    %v467 = vrot.slane %v376, %v466
    %v468 = vlaneseq
    %v469 = vshrl.u32 %v468, 7
    %v470 = vsub.s32 %v448, %v469
    %v471 = vrot.slane %v377, %v470
    %v472 = vsel %vm453, %v471, %v467
    %v473 = vlaneseq
    %v474 = vshrl.u32 %v473, 7
    %v475 = vsub.s32 %v443, %v474
    %v476 = vrot.slane %v378, %v475
    %v477 = vlaneseq
    %v478 = vshrl.u32 %v477, 7
    %v479 = vsub.s32 %v448, %v478
    %v480 = vrot.slane %v379, %v479
    %v481 = vsel %vm453, %v480, %v476
    %v482 = vsel %vm281, %v463, %v454
    %v483 = vsel %vm283, %v472, %v482
    %v484 = vsel %vm285, %v481, %v483
    %486 = vst.msk [vmem:[#allocation4 + $0x3] sm:$0xf] %vm300, %v484
    %v487 = vld [vmem:[#allocation4] sm:$0xf]
    %488 = vst.msk [vmem:[#allocation7] sm:$0xf] %vm303, %v487
    %v489 = vld [vmem:[#allocation4 + $0x1] sm:$0xf]
    %491 = vrot.lane.b32.xlu0 %v489, 32
    %v492 = vpop.permute.xlu0 %491
    %494 = vst.msk [vmem:[#allocation7] sm:$0xf] %vm310, %v492
    %v495 = vld [vmem:[#allocation4 + $0x2] sm:$0xf]
    %497 = vrot.lane.b32.xlu0 %v495, 64
    %v498 = vpop.permute.xlu0 %497
    %500 = vst.msk [vmem:[#allocation7] sm:$0xf] %vm317, %v498
    %v501 = vld [vmem:[#allocation4 + $0x3] sm:$0xf]
    %503 = vrot.lane.b32.xlu0 %v501, 96
    %v504 = vpop.permute.xlu0 %503
    %506 = vst.msk [vmem:[#allocation7] sm:$0xf] %vm324, %v504
    %v507 = vld [vmem:[#allocation4 + $0x4] sm:$0xf]
    %508 = vst.msk [vmem:[#allocation7 + $0x8] sm:$0xf] %vm303, %v507
    %v509 = vld [vmem:[#allocation4 + $0x5] sm:$0xf]
    %511 = vrot.lane.b32.xlu0 %v509, 32
    %v512 = vpop.permute.xlu0 %511
    %514 = vst.msk [vmem:[#allocation7 + $0x8] sm:$0xf] %vm310, %v512
    %v515 = vld [vmem:[#allocation4 + $0x6] sm:$0xf]
    %517 = vrot.lane.b32.xlu0 %v515, 64
    %v518 = vpop.permute.xlu0 %517
    %520 = vst.msk [vmem:[#allocation7 + $0x8] sm:$0xf] %vm317, %v518
    %s521 = scalar_lea.vmem [#allocation15], 64
    %v522 = vld [vmem:[%s521] sm:$0xff]
    %v523 = vld [vmem:[%s521 + $0x8] sm:$0xff]
    %v524 = vld [vmem:[%s521 + $0x10] sm:$0xff]
    %v525 = vld [vmem:[%s521 + $0x18] sm:$0xff]
    %v526 = vld [vmem:[%s521 + $0x20] sm:$0xff]
    %v527 = vld [vmem:[%s521 + $0x28] sm:$0xff]
    %v528 = vld [vmem:[%s521 + $0x30] sm:$0xff]
    %v529 = vld [vmem:[%s521 + $0x38] sm:$0xff]
    %v530 = vsel %vm96, %v522, -inf
    %v531 = vsel %vm96, %v524, -inf
    %v532 = vsel %vm96, %v526, -inf
    %v533 = vmax.f32 %v530, %v532
    %v534 = vsel %vm96, %v528, -inf
    %v535 = vmax.f32 %v531, %v534
    %v536 = vmax.f32 %v533, %v535
    %v537 = vsel %vm96, %v523, -inf
    %v538 = vsel %vm96, %v525, -inf
    %v539 = vsel %vm96, %v527, -inf
    %v540 = vmax.f32 %v537, %v539
    %v541 = vsel %vm96, %v529, -inf
    %v542 = vmax.f32 %v538, %v541
    %v543 = vmax.f32 %v540, %v542
    %v544 = vsel %vm96, %v522, 0.0
    %v545 = vsel %vm96, %v524, 0.0
    %v546 = vadd.f32 %v544, %v545
    %v547 = vsel %vm96, %v526, 0.0
    %v548 = vadd.f32 %v546, %v547
    %v549 = vsel %vm96, %v528, 0.0
    %v550 = vadd.f32 %v548, %v549
    %v551 = vsel %vm96, %v523, 0.0
    %v552 = vsel %vm96, %v525, 0.0
    %v553 = vadd.f32 %v551, %v552
    %v554 = vsel %vm96, %v527, 0.0
    %v555 = vadd.f32 %v553, %v554
    %v556 = vsel %vm96, %v529, 0.0
    %v557 = vadd.f32 %v555, %v556
    %v558 = vmul.f32 %v550, 0.25
    %v559 = vmul.f32 %v557, 0.25
    %560 = vst.msk [vmem:[#allocation2] sm:$0x7] %vm127, 0.0
    %561 = vst.msk [vmem:[#allocation2 + $0x13] sm:$0x7] %vm127, 0.0
    %562 = vst.msk [vmem:[#allocation2 + $0x3] sm:$0xff] %vm96, %v536
    %563 = vst.msk [vmem:[#allocation2 + $0xb] sm:$0xff] %vm96, %v543
    %566 = vrot.lane.b32.xlu0 %v558, 16
    %v567 = vpop.permute.xlu0 %566
    %568 = vrot.lane.b32.xlu0 %v559, 16
    %v569 = vpop.permute.xlu0 %568
    %572 = vst.msk [vmem:[#allocation2 + $0x3] sm:$0xff] %vm140, %v567
    %573 = vst.msk [vmem:[#allocation2 + $0xb] sm:$0xff] %vm140, %v569
    %v574 = vld [vmem:[#allocation2] sm:$0xff]
    %v575 = vld [vmem:[#allocation2 + $0x8] sm:$0xff]
    %576 = vst.msk [vmem:[#allocation5 + $0x20] sm:$0xff] %vm145, %v574
    %577 = vst.msk [vmem:[#allocation5 + $0x30] sm:$0xff] %vm145, %v575
    %v578 = vld [vmem:[#allocation2 + $0x1] sm:$0xff]
    %v579 = vld [vmem:[#allocation2 + $0x9] sm:$0xff]
    %582 = vrot.lane.b32.xlu0 %v578, 32
    %v583 = vpop.permute.xlu0 %582
    %584 = vrot.lane.b32.xlu0 %v579, 32
    %v585 = vpop.permute.xlu0 %584
    %588 = vst.msk [vmem:[#allocation5 + $0x20] sm:$0xff] %vm158, %v583
    %589 = vst.msk [vmem:[#allocation5 + $0x30] sm:$0xff] %vm158, %v585
    %v590 = vld [vmem:[#allocation2 + $0x2] sm:$0xff]
    %v591 = vld [vmem:[#allocation2 + $0xa] sm:$0xff]
    %594 = vrot.lane.b32.xlu0 %v590, 64
    %v595 = vpop.permute.xlu0 %594
    %596 = vrot.lane.b32.xlu0 %v591, 64
    %v597 = vpop.permute.xlu0 %596
    %600 = vst.msk [vmem:[#allocation5 + $0x20] sm:$0xff] %vm171, %v595
    %601 = vst.msk [vmem:[#allocation5 + $0x30] sm:$0xff] %vm171, %v597
    %v602 = vld [vmem:[#allocation2 + $0x3] sm:$0xff]
    %v603 = vld [vmem:[#allocation2 + $0xb] sm:$0xff]
    %606 = vrot.lane.b32.xlu0 %v602, 96
    %v607 = vpop.permute.xlu0 %606
    %608 = vrot.lane.b32.xlu0 %v603, 96
    %v609 = vpop.permute.xlu0 %608
    %612 = vst.msk [vmem:[#allocation5 + $0x20] sm:$0xff] %vm184, %v607
    %613 = vst.msk [vmem:[#allocation5 + $0x30] sm:$0xff] %vm184, %v609
    %v614 = vld [vmem:[#allocation2 + $0x4] sm:$0xff]
    %v615 = vld [vmem:[#allocation2 + $0xc] sm:$0xff]
    %616 = vst.msk [vmem:[#allocation5 + $0x28] sm:$0xff] %vm145, %v614
    %617 = vst.msk [vmem:[#allocation5 + $0x38] sm:$0xff] %vm145, %v615
    %v618 = vld [vmem:[#allocation2 + $0x5] sm:$0xff]
    %v619 = vld [vmem:[#allocation2 + $0xd] sm:$0xff]
    %622 = vrot.lane.b32.xlu0 %v618, 32
    %v623 = vpop.permute.xlu0 %622
    %624 = vrot.lane.b32.xlu0 %v619, 32
    %v625 = vpop.permute.xlu0 %624
    %628 = vst.msk [vmem:[#allocation5 + $0x28] sm:$0xff] %vm158, %v623
    %629 = vst.msk [vmem:[#allocation5 + $0x38] sm:$0xff] %vm158, %v625
    %v630 = vld [vmem:[#allocation2 + $0x6] sm:$0xff]
    %v631 = vld [vmem:[#allocation2 + $0xe] sm:$0xff]
    %634 = vrot.lane.b32.xlu0 %v630, 64
    %v635 = vpop.permute.xlu0 %634
    %636 = vrot.lane.b32.xlu0 %v631, 64
    %v637 = vpop.permute.xlu0 %636
    %640 = vst.msk [vmem:[#allocation5 + $0x28] sm:$0xff] %vm171, %v635
    %641 = vst.msk [vmem:[#allocation5 + $0x38] sm:$0xff] %vm171, %v637
    %v642 = vmax.f32 %v530, %v537
    %v643 = vrot.slane %v642, 4
    %v644 = vmax.f32 %v642, %v643
    %v645 = vrot.slane %v644, 2
    %v646 = vmax.f32 %v644, %v645
    %v647 = vrot.slane %v646, 1
    %v648 = vmax.f32 %v646, %v647
    %v649 = vmax.f32 %v531, %v538
    %v650 = vrot.slane %v649, 4
    %v651 = vmax.f32 %v649, %v650
    %v652 = vrot.slane %v651, 2
    %v653 = vmax.f32 %v651, %v652
    %v654 = vrot.slane %v653, 1
    %v655 = vmax.f32 %v653, %v654
    %v656 = vmax.f32 %v532, %v539
    %v657 = vrot.slane %v656, 4
    %v658 = vmax.f32 %v656, %v657
    %v659 = vrot.slane %v658, 2
    %v660 = vmax.f32 %v658, %v659
    %v661 = vrot.slane %v660, 1
    %v662 = vmax.f32 %v660, %v661
    %v663 = vmax.f32 %v534, %v541
    %v664 = vrot.slane %v663, 4
    %v665 = vmax.f32 %v663, %v664
    %v666 = vrot.slane %v665, 2
    %v667 = vmax.f32 %v665, %v666
    %v668 = vrot.slane %v667, 1
    %v669 = vmax.f32 %v667, %v668
    %v670 = vadd.f32 %v544, %v551
    %v671 = vrot.slane %v670, 4
    %v672 = vadd.f32 %v670, %v671
    %v673 = vrot.slane %v672, 2
    %v674 = vadd.f32 %v672, %v673
    %v675 = vrot.slane %v674, 1
    %v676 = vadd.f32 %v674, %v675
    %v677 = vadd.f32 %v545, %v552
    %v678 = vrot.slane %v677, 4
    %v679 = vadd.f32 %v677, %v678
    %v680 = vrot.slane %v679, 2
    %v681 = vadd.f32 %v679, %v680
    %v682 = vrot.slane %v681, 1
    %v683 = vadd.f32 %v681, %v682
    %v684 = vadd.f32 %v547, %v554
    %v685 = vrot.slane %v684, 4
    %v686 = vadd.f32 %v684, %v685
    %v687 = vrot.slane %v686, 2
    %v688 = vadd.f32 %v686, %v687
    %v689 = vrot.slane %v688, 1
    %v690 = vadd.f32 %v688, %v689
    %v691 = vadd.f32 %v549, %v556
    %v692 = vrot.slane %v691, 4
    %v693 = vadd.f32 %v691, %v692
    %v694 = vrot.slane %v693, 2
    %v695 = vadd.f32 %v693, %v694
    %v696 = vrot.slane %v695, 1
    %v697 = vadd.f32 %v695, %v696
    %v698 = vmul.f32 %v676, 0.0625
    %v699 = vmul.f32 %v683, 0.0625
    %v700 = vmul.f32 %v690, 0.0625
    %v701 = vmul.f32 %v697, 0.0625
    %702 = vst.msk [vmem:[#allocation3] sm:$0x7] %vm127, 0.0
    %703 = vst.msk [vmem:[#allocation3 + $0x7] sm:$0x7] %vm127, 0.0
    %v708 = vsel %vm281, %v655, %v648
    %v709 = vsel %vm283, %v662, %v708
    %v710 = vsel %vm285, %v669, %v709
    %712 = vst.msk [vmem:[#allocation3 + $0x3] sm:$0xf] %vm288, %v710
    %v717 = vsel %vm281, %v699, %v698
    %v718 = vsel %vm283, %v700, %v717
    %v719 = vsel %vm285, %v701, %v718
    %720 = vrot.lane.b32.xlu0 %v719, 16
    %v721 = vpop.permute.xlu0 %720
    %723 = vst.msk [vmem:[#allocation3 + $0x3] sm:$0xf] %vm300, %v721
    %v724 = vld [vmem:[#allocation3] sm:$0xf]
    %v726 = vrot.slane %v724, 4
    %vm728 = vcmask 261124
    %729 = vst.msk [vmem:[#allocation6] sm:$0xf0] %vm728, %v726
    %v730 = vld [vmem:[#allocation3 + $0x1] sm:$0xf]
    %v732 = vrot.slane %v730, 4
    %733 = vrot.lane.b32.xlu0 %v732, 32
    %v734 = vpop.permute.xlu0 %733
    %vm736 = vcmask 523524
    %737 = vst.msk [vmem:[#allocation6] sm:$0xf0] %vm736, %v734
    %v738 = vld [vmem:[#allocation3 + $0x2] sm:$0xf]
    %v740 = vrot.slane %v738, 4
    %741 = vrot.lane.b32.xlu0 %v740, 64
    %v742 = vpop.permute.xlu0 %741
    %vm744 = vcmask 785924
    %745 = vst.msk [vmem:[#allocation6] sm:$0xf0] %vm744, %v742
    %v746 = vld [vmem:[#allocation3 + $0x3] sm:$0xf]
    %v748 = vrot.slane %v746, 4
    %749 = vrot.lane.b32.xlu0 %v748, 96
    %v750 = vpop.permute.xlu0 %749
    %vm752 = vcmask 1048324
    %753 = vst.msk [vmem:[#allocation6] sm:$0xf0] %vm752, %v750
    %v754 = vld [vmem:[#allocation3 + $0x4] sm:$0xf]
    %v756 = vrot.slane %v754, 4
    %758 = vst.msk [vmem:[#allocation6 + $0x8] sm:$0xf0] %vm728, %v756
    %v759 = vld [vmem:[#allocation3 + $0x5] sm:$0xf]
    %v761 = vrot.slane %v759, 4
    %762 = vrot.lane.b32.xlu0 %v761, 32
    %v763 = vpop.permute.xlu0 %762
    %765 = vst.msk [vmem:[#allocation6 + $0x8] sm:$0xf0] %vm736, %v763
    %v766 = vld [vmem:[#allocation3 + $0x6] sm:$0xf]
    %v768 = vrot.slane %v766, 4
    %769 = vrot.lane.b32.xlu0 %v768, 64
    %v770 = vpop.permute.xlu0 %769
    %772 = vst.msk [vmem:[#allocation6 + $0x8] sm:$0xf0] %vm744, %v770
    %773 = vmax.xlane.f32.xlu0 %v530
    %v774 = vpop.xlane.xlu0 %773
    %775 = vmax.xlane.f32.xlu0 %v537
    %v776 = vpop.xlane.xlu0 %775
    %777 = vmax.xlane.f32.xlu0 %v531
    %v778 = vpop.xlane.xlu0 %777
    %779 = vmax.xlane.f32.xlu0 %v538
    %v780 = vpop.xlane.xlu0 %779
    %781 = vmax.xlane.f32.xlu0 %v532
    %v782 = vpop.xlane.xlu0 %781
    %783 = vmax.xlane.f32.xlu0 %v539
    %v784 = vpop.xlane.xlu0 %783
    %785 = vmax.xlane.f32.xlu0 %v534
    %v786 = vpop.xlane.xlu0 %785
    %787 = vmax.xlane.f32.xlu0 %v541
    %v788 = vpop.xlane.xlu0 %787
    %789 = vadd.xlane.f32.xlu0 %v544
    %v790 = vpop.xlane.xlu0 %789
    %791 = vadd.xlane.f32.xlu0 %v551
    %v792 = vpop.xlane.xlu0 %791
    %793 = vadd.xlane.f32.xlu0 %v545
    %v794 = vpop.xlane.xlu0 %793
    %795 = vadd.xlane.f32.xlu0 %v552
    %v796 = vpop.xlane.xlu0 %795
    %797 = vadd.xlane.f32.xlu0 %v547
    %v798 = vpop.xlane.xlu0 %797
    %799 = vadd.xlane.f32.xlu0 %v554
    %v800 = vpop.xlane.xlu0 %799
    %801 = vadd.xlane.f32.xlu0 %v549
    %v802 = vpop.xlane.xlu0 %801
    %803 = vadd.xlane.f32.xlu0 %v556
    %v804 = vpop.xlane.xlu0 %803
    %v805 = vmul.f32 %v790, 0.0625
    %v806 = vmul.f32 %v792, 0.0625
    %v807 = vmul.f32 %v794, 0.0625
    %v808 = vmul.f32 %v796, 0.0625
    %v809 = vmul.f32 %v798, 0.0625
    %v810 = vmul.f32 %v800, 0.0625
    %v811 = vmul.f32 %v802, 0.0625
    %v812 = vmul.f32 %v804, 0.0625
    %813 = vst.msk [vmem:[#allocation4] sm:$0x7] %vm127, 0.0
    %814 = vst.msk [vmem:[#allocation4 + $0x7] sm:$0x7] %vm127, 0.0
    %v823 = vlaneseq
    %v824 = vshrl.u32 %v823, 7
    %v825 = vsub.s32 %v391, %v824
    %v826 = vrot.slane %v774, %v825
    %v827 = vlaneseq
    %v828 = vshrl.u32 %v827, 7
    %v829 = vsub.s32 %v396, %v828
    %v830 = vrot.slane %v776, %v829
    %v831 = vsel %vm401, %v830, %v826
    %v832 = vlaneseq
    %v833 = vshrl.u32 %v832, 7
    %v834 = vsub.s32 %v391, %v833
    %v835 = vrot.slane %v778, %v834
    %v836 = vlaneseq
    %v837 = vshrl.u32 %v836, 7
    %v838 = vsub.s32 %v396, %v837
    %v839 = vrot.slane %v780, %v838
    %v840 = vsel %vm401, %v839, %v835
    %v841 = vlaneseq
    %v842 = vshrl.u32 %v841, 7
    %v843 = vsub.s32 %v391, %v842
    %v844 = vrot.slane %v782, %v843
    %v845 = vlaneseq
    %v846 = vshrl.u32 %v845, 7
    %v847 = vsub.s32 %v396, %v846
    %v848 = vrot.slane %v784, %v847
    %v849 = vsel %vm401, %v848, %v844
    %v850 = vlaneseq
    %v851 = vshrl.u32 %v850, 7
    %v852 = vsub.s32 %v391, %v851
    %v853 = vrot.slane %v786, %v852
    %v854 = vlaneseq
    %v855 = vshrl.u32 %v854, 7
    %v856 = vsub.s32 %v396, %v855
    %v857 = vrot.slane %v788, %v856
    %v858 = vsel %vm401, %v857, %v853
    %v859 = vsel %vm281, %v840, %v831
    %v860 = vsel %vm283, %v849, %v859
    %v861 = vsel %vm285, %v858, %v860
    %863 = vst.msk [vmem:[#allocation4 + $0x3] sm:$0xf] %vm288, %v861
    %v872 = vlaneseq
    %v873 = vshrl.u32 %v872, 7
    %v874 = vsub.s32 %v443, %v873
    %v875 = vrot.slane %v805, %v874
    %v876 = vlaneseq
    %v877 = vshrl.u32 %v876, 7
    %v878 = vsub.s32 %v448, %v877
    %v879 = vrot.slane %v806, %v878
    %v880 = vsel %vm453, %v879, %v875
    %v881 = vlaneseq
    %v882 = vshrl.u32 %v881, 7
    %v883 = vsub.s32 %v443, %v882
    %v884 = vrot.slane %v807, %v883
    %v885 = vlaneseq
    %v886 = vshrl.u32 %v885, 7
    %v887 = vsub.s32 %v448, %v886
    %v888 = vrot.slane %v808, %v887
    %v889 = vsel %vm453, %v888, %v884
    %v890 = vlaneseq
    %v891 = vshrl.u32 %v890, 7
    %v892 = vsub.s32 %v443, %v891
    %v893 = vrot.slane %v809, %v892
    %v894 = vlaneseq
    %v895 = vshrl.u32 %v894, 7
    %v896 = vsub.s32 %v448, %v895
    %v897 = vrot.slane %v810, %v896
    %v898 = vsel %vm453, %v897, %v893
    %v899 = vlaneseq
    %v900 = vshrl.u32 %v899, 7
    %v901 = vsub.s32 %v443, %v900
    %v902 = vrot.slane %v811, %v901
    %v903 = vlaneseq
    %v904 = vshrl.u32 %v903, 7
    %v905 = vsub.s32 %v448, %v904
    %v906 = vrot.slane %v812, %v905
    %v907 = vsel %vm453, %v906, %v902
    %v908 = vsel %vm281, %v889, %v880
    %v909 = vsel %vm283, %v898, %v908
    %v910 = vsel %vm285, %v907, %v909
    %912 = vst.msk [vmem:[#allocation4 + $0x3] sm:$0xf] %vm300, %v910
    %v913 = vld [vmem:[#allocation4] sm:$0xf]
    %v915 = vrot.slane %v913, 4
    %917 = vst.msk [vmem:[#allocation7] sm:$0xf0] %vm728, %v915
    %v918 = vld [vmem:[#allocation4 + $0x1] sm:$0xf]
    %v920 = vrot.slane %v918, 4
    %921 = vrot.lane.b32.xlu0 %v920, 32
    %v922 = vpop.permute.xlu0 %921
    %924 = vst.msk [vmem:[#allocation7] sm:$0xf0] %vm736, %v922
    %v925 = vld [vmem:[#allocation4 + $0x2] sm:$0xf]
    %v927 = vrot.slane %v925, 4
    %928 = vrot.lane.b32.xlu0 %v927, 64
    %v929 = vpop.permute.xlu0 %928
    %931 = vst.msk [vmem:[#allocation7] sm:$0xf0] %vm744, %v929
    %v932 = vld [vmem:[#allocation4 + $0x3] sm:$0xf]
    %v934 = vrot.slane %v932, 4
    %935 = vrot.lane.b32.xlu0 %v934, 96
    %v936 = vpop.permute.xlu0 %935
    %938 = vst.msk [vmem:[#allocation7] sm:$0xf0] %vm752, %v936
    %v939 = vld [vmem:[#allocation4 + $0x4] sm:$0xf]
    %v941 = vrot.slane %v939, 4
    %943 = vst.msk [vmem:[#allocation7 + $0x8] sm:$0xf0] %vm728, %v941
    %v944 = vld [vmem:[#allocation4 + $0x5] sm:$0xf]
    %v946 = vrot.slane %v944, 4
    %947 = vrot.lane.b32.xlu0 %v946, 32
    %v948 = vpop.permute.xlu0 %947
    %950 = vst.msk [vmem:[#allocation7 + $0x8] sm:$0xf0] %vm736, %v948
    %v951 = vld [vmem:[#allocation4 + $0x6] sm:$0xf]
    %v953 = vrot.slane %v951, 4
    %954 = vrot.lane.b32.xlu0 %v953, 64
    %v955 = vpop.permute.xlu0 %954
    %957 = vst.msk [vmem:[#allocation7 + $0x8] sm:$0xf0] %vm744, %v955
    %s958 = sld [smem:[#allocation11]]
    %v959 = vld [vmem:[#allocation5] sm:$0xff]
    %v960 = vld [vmem:[#allocation5 + $0x8] sm:$0xff]
    %v961 = vld [vmem:[#allocation5 + $0x10] sm:$0xff]
    %v962 = vld [vmem:[#allocation5 + $0x18] sm:$0xff]
    %v963 = vld [vmem:[#allocation5 + $0x20] sm:$0xff]
    %v964 = vld [vmem:[#allocation5 + $0x28] sm:$0xff]
    %v965 = vld [vmem:[#allocation5 + $0x30] sm:$0xff]
    %v966 = vld [vmem:[#allocation5 + $0x38] sm:$0xff]
    %v967 = vpack.c.bf16 %v961, %v959
    %v968 = vpack.c.bf16 %v962, %v960
    %v969 = vpack.c.bf16 %v965, %v963
    %v970 = vpack.c.bf16 %v966, %v964
    %v971 = vld [vmem:[#allocation16] sm:$0xf]
    %v972 = vld [vmem:[#allocation16 + $0x4] sm:$0xf]
    %v973 = vld [vmem:[#allocation16 + $0x8] sm:$0xf]
    %v974 = vld [vmem:[#allocation16 + $0xc] sm:$0xf]
    %v975 = vld [vmem:[#allocation16 + $0x10] sm:$0xf]
    %v976 = vld [vmem:[#allocation16 + $0x14] sm:$0xf]
    %v977 = vld [vmem:[#allocation16 + $0x18] sm:$0xf]
    %v978 = vld [vmem:[#allocation16 + $0x1c] sm:$0xf]
    %v979 = vld [vmem:[#allocation16 + $0x20] sm:$0xf]
    %v980 = vld [vmem:[#allocation16 + $0x24] sm:$0xf]
    %v981 = vld [vmem:[#allocation16 + $0x28] sm:$0xf]
    %v982 = vld [vmem:[#allocation16 + $0x2c] sm:$0xf]
    %v983 = vld [vmem:[#allocation16 + $0x30] sm:$0xf]
    %v984 = vld [vmem:[#allocation16 + $0x34] sm:$0xf]
    %v985 = vld [vmem:[#allocation16 + $0x38] sm:$0xf]
    %v986 = vld [vmem:[#allocation16 + $0x3c] sm:$0xf]
    %v987 = vld [vmem:[#allocation16 + $0x40] sm:$0xf]
    %v988 = vld [vmem:[#allocation16 + $0x44] sm:$0xf]
    %v989 = vld [vmem:[#allocation16 + $0x48] sm:$0xf]
    %v990 = vld [vmem:[#allocation16 + $0x4c] sm:$0xf]
    %v991 = vld [vmem:[#allocation16 + $0x50] sm:$0xf]
    %v992 = vld [vmem:[#allocation16 + $0x54] sm:$0xf]
    %v993 = vld [vmem:[#allocation16 + $0x58] sm:$0xf]
    %v994 = vld [vmem:[#allocation16 + $0x5c] sm:$0xf]
    %v995 = vld [vmem:[#allocation16 + $0x60] sm:$0xf]
    %v996 = vld [vmem:[#allocation16 + $0x64] sm:$0xf]
    %v997 = vld [vmem:[#allocation16 + $0x68] sm:$0xf]
    %v998 = vld [vmem:[#allocation16 + $0x6c] sm:$0xf]
    %v999 = vstv %s958
    %v1028 = vunpack.c.l.b16 %v971
    %v1029 = vunpack.c.l.b16 %v972
    %v1030 = vunpack.c.l.b16 %v973
    %v1031 = vunpack.c.l.b16 %v974
    %v1032 = vunpack.c.l.b16 %v975
    %v1033 = vunpack.c.l.b16 %v976
    %v1034 = vunpack.c.l.b16 %v977
    %v1035 = vunpack.c.l.b16 %v978
    %v1036 = vunpack.c.l.b16 %v979
    %v1037 = vunpack.c.l.b16 %v980
    %v1038 = vunpack.c.l.b16 %v981
    %v1039 = vunpack.c.l.b16 %v982
    %v1040 = vunpack.c.l.b16 %v983
    %v1041 = vunpack.c.l.b16 %v984
    %v1042 = vunpack.c.l.b16 %v985
    %v1043 = vunpack.c.l.b16 %v986
    %v1044 = vunpack.c.l.b16 %v987
    %v1045 = vunpack.c.l.b16 %v988
    %v1046 = vunpack.c.l.b16 %v989
    %v1047 = vunpack.c.l.b16 %v990
    %v1048 = vunpack.c.l.b16 %v991
    %v1049 = vunpack.c.l.b16 %v992
    %v1050 = vunpack.c.l.b16 %v993
    %v1051 = vunpack.c.l.b16 %v994
    %v1052 = vunpack.c.l.b16 %v995
    %v1053 = vunpack.c.l.b16 %v996
    %v1054 = vunpack.c.l.b16 %v997
    %v1055 = vunpack.c.l.b16 %v998
    %v1056 = vpack.c.b16 %v1029, %v1028
    %v1057 = vpack.c.b16 %v1031, %v1030
    %v1058 = vpack.c.b16 %v1033, %v1032
    %v1059 = vpack.c.b16 %v1035, %v1034
    %v1060 = vpack.c.b16 %v1037, %v1036
    %v1061 = vpack.c.b16 %v1039, %v1038
    %v1062 = vpack.c.b16 %v1041, %v1040
    %v1063 = vpack.c.b16 %v1043, %v1042
    %v1064 = vpack.c.b16 %v1045, %v1044
    %v1065 = vpack.c.b16 %v1047, %v1046
    %v1066 = vpack.c.b16 %v1049, %v1048
    %v1067 = vpack.c.b16 %v1051, %v1050
    %v1068 = vpack.c.b16 %v1053, %v1052
    %v1069 = vpack.c.b16 %v1055, %v1054
    %vm1084 = vcmask 785408
    %v1086 = vsel %vm1084, %v968, 0
    %v1089 = vsel %vm1084, %v970, 0
    %1091 = vmatprep.subr.bf16.mxu0 0
    %1092 = vmatpush1.bf16.msra.mxu0 %v1056
    %1093 = vmatprep.subr.bf16.mxu0 0
    %1094 = vmatpush1.bf16.msra.mxu0 %v1057
    %1095 = vmatprep.subr.bf16.mxu0 0
    %1096 = vmatpush1.bf16.msra.mxu0 %v1058
    %1097 = vmatprep.subr.bf16.mxu0 0
    %1098 = vmatpush1.bf16.msra.mxu0 %v1059
    %1099 = vmatprep.subr.bf16.mxu0 0
    %1100 = vmatpush1.bf16.msra.mxu0 %v1060
    %1101 = vmatprep.subr.bf16.mxu0 0
    %1102 = vmatpush1.bf16.msra.mxu0 %v1061
    %1103 = vmatprep.subr.bf16.mxu0 0
    %1104 = vmatpush1.bf16.msra.mxu0 %v1062
    %1105 = vmatprep.subr.bf16.mxu0 0
    %1106 = vmatpush1.bf16.msra.mxu0 %v1063
    %1107 = vmatprep.subr.bf16.mxu0 0
    %1108 = vmatpush1.bf16.msra.mxu0 %v1064
    %1109 = vmatprep.subr.bf16.mxu0 0
    %1110 = vmatpush1.bf16.msra.mxu0 %v1065
    %1111 = vmatprep.subr.bf16.mxu0 0
    %1112 = vmatpush1.bf16.msra.mxu0 %v1066
    %1113 = vmatprep.subr.bf16.mxu0 0
    %1114 = vmatpush1.bf16.msra.mxu0 %v1067
    %1115 = vmatprep.subr.bf16.mxu0 0
    %1116 = vmatpush1.bf16.msra.mxu0 %v1068
    %1117 = vmatprep.subr.bf16.mxu0 0
    %1118 = vmatpush1.bf16.msra.mxu0 %v1069
    %1119 = vmatprep.subr.bf16.mxu0 0
    %1120 = vmatpush1.bf16.msra.mxu0 0
    %1121 = vmatprep.subr.bf16.mxu0 0
    %1122 = vmatpush1.bf16.msra.mxu0 0
    %1123 = vmatprep.mubr.bf16.mxu0 %v1086
    %1124 = vmatmul.mubr.bf16.gmra.mrb[0].mxu0 %v967
    %v1125 = vpop.f32.mrb[0].mxu0
    %v1126 = vadd.f32 %v999, %v1125
    %v1127 = vpop.f32.mrb[0].mxu0
    %v1128 = vpop.f32.mrb[0].mxu0
    %v1129 = vadd.f32 %v999, %v1128
    %v1130 = vpop.f32.mrb[0].mxu0
    %1131 = vmatprep.mubr.bf16.mxu0 %v1089
    %1132 = vmatmul.mubr.bf16.gmra.mrb[0].mxu0 %v969
    %v1133 = vpop.f32.mrb[0].mxu0
    %v1134 = vadd.f32 %v999, %v1133
    %v1135 = vpop.f32.mrb[0].mxu0
    %v1136 = vpop.f32.mrb[0].mxu0
    %v1137 = vadd.f32 %v999, %v1136
    %v1138 = vpop.f32.mrb[0].mxu0
    %1139 = vdwg.mxu0
    %v1140 = vxor.u32 %v1126, 2147483648
    %v1141 = vxor.u32 %v1129, 2147483648
    %v1142 = vxor.u32 %v1134, 2147483648
    %v1143 = vxor.u32 %v1137, 2147483648
    %v1144 = vmul.f32 %v1140, 1.442695
    %v1145 = vpow.pop %v1144
    %v1146 = vmul.f32 %v1141, 1.442695
    %v1147 = vpow.pop %v1146
    %v1148 = vmul.f32 %v1142, 1.442695
    %v1149 = vpow.pop %v1148
    %v1150 = vmul.f32 %v1143, 1.442695
    %v1151 = vpow.pop %v1150
    %v1152 = vadd.f32 %v1145, 1.0
    %v1153 = vadd.f32 %v1147, 1.0
    %v1154 = vadd.f32 %v1149, 1.0
    %v1155 = vadd.f32 %v1151, 1.0
    %v1156 = vrcp.pop %v1152
    %v1157 = vmul.f32 1.0, %v1156
    %v1158 = vrcp.pop %v1153
    %v1159 = vmul.f32 1.0, %v1158
    %v1160 = vrcp.pop %v1154
    %v1161 = vmul.f32 1.0, %v1160
    %v1162 = vrcp.pop %v1155
    %v1163 = vmul.f32 1.0, %v1162
    %1164 = vst.msk [vmem:[#allocation8] sm:$0xff] %vm96, %v1157
    %1165 = vst.msk [vmem:[#allocation8 + $0x8] sm:$0xff] %vm96, %v1159
    %1166 = vst.msk [vmem:[#allocation8 + $0x10] sm:$0xff] %vm96, %v1161
    %1167 = vst.msk [vmem:[#allocation8 + $0x18] sm:$0xff] %vm96, %v1163
    %s1168 = sld [smem:[#allocation11 + $0x1]]
    %v1169 = vld [vmem:[#allocation6] sm:$0xff]
    %v1170 = vld [vmem:[#allocation6 + $0x8] sm:$0xff]
    %v1171 = vpack.c.bf16 %v1169, %v1169
    %v1172 = vpack.c.bf16 %v1170, %v1170
    %v1173 = vld [vmem:[#allocation18] sm:$0xf]
    %v1174 = vld [vmem:[#allocation18 + $0x4] sm:$0xf]
    %v1175 = vld [vmem:[#allocation18 + $0x8] sm:$0xf]
    %v1176 = vld [vmem:[#allocation18 + $0xc] sm:$0xf]
    %v1177 = vld [vmem:[#allocation18 + $0x10] sm:$0xf]
    %v1178 = vld [vmem:[#allocation18 + $0x14] sm:$0xf]
    %v1179 = vld [vmem:[#allocation18 + $0x18] sm:$0xf]
    %v1180 = vld [vmem:[#allocation18 + $0x1c] sm:$0xf]
    %v1181 = vld [vmem:[#allocation18 + $0x20] sm:$0xf]
    %v1182 = vld [vmem:[#allocation18 + $0x24] sm:$0xf]
    %v1183 = vld [vmem:[#allocation18 + $0x28] sm:$0xf]
    %v1184 = vld [vmem:[#allocation18 + $0x2c] sm:$0xf]
    %v1185 = vld [vmem:[#allocation18 + $0x30] sm:$0xf]
    %v1186 = vld [vmem:[#allocation18 + $0x34] sm:$0xf]
    %v1187 = vld [vmem:[#allocation18 + $0x38] sm:$0xf]
    %v1188 = vld [vmem:[#allocation18 + $0x3c] sm:$0xf]
    %v1189 = vld [vmem:[#allocation18 + $0x40] sm:$0xf]
    %v1190 = vld [vmem:[#allocation18 + $0x44] sm:$0xf]
    %v1191 = vld [vmem:[#allocation18 + $0x48] sm:$0xf]
    %v1192 = vld [vmem:[#allocation18 + $0x4c] sm:$0xf]
    %v1193 = vld [vmem:[#allocation18 + $0x50] sm:$0xf]
    %v1194 = vld [vmem:[#allocation18 + $0x54] sm:$0xf]
    %v1195 = vld [vmem:[#allocation18 + $0x58] sm:$0xf]
    %v1196 = vld [vmem:[#allocation18 + $0x5c] sm:$0xf]
    %v1197 = vld [vmem:[#allocation18 + $0x60] sm:$0xf]
    %v1198 = vld [vmem:[#allocation18 + $0x64] sm:$0xf]
    %v1199 = vld [vmem:[#allocation18 + $0x68] sm:$0xf]
    %v1200 = vld [vmem:[#allocation18 + $0x6c] sm:$0xf]
    %v1201 = vstv %s1168
    %v1230 = vunpack.c.l.b16 %v1173
    %v1231 = vunpack.c.l.b16 %v1174
    %v1232 = vunpack.c.l.b16 %v1175
    %v1233 = vunpack.c.l.b16 %v1176
    %v1234 = vunpack.c.l.b16 %v1177
    %v1235 = vunpack.c.l.b16 %v1178
    %v1236 = vunpack.c.l.b16 %v1179
    %v1237 = vunpack.c.l.b16 %v1180
    %v1238 = vunpack.c.l.b16 %v1181
    %v1239 = vunpack.c.l.b16 %v1182
    %v1240 = vunpack.c.l.b16 %v1183
    %v1241 = vunpack.c.l.b16 %v1184
    %v1242 = vunpack.c.l.b16 %v1185
    %v1243 = vunpack.c.l.b16 %v1186
    %v1244 = vunpack.c.l.b16 %v1187
    %v1245 = vunpack.c.l.b16 %v1188
    %v1246 = vunpack.c.l.b16 %v1189
    %v1247 = vunpack.c.l.b16 %v1190
    %v1248 = vunpack.c.l.b16 %v1191
    %v1249 = vunpack.c.l.b16 %v1192
    %v1250 = vunpack.c.l.b16 %v1193
    %v1251 = vunpack.c.l.b16 %v1194
    %v1252 = vunpack.c.l.b16 %v1195
    %v1253 = vunpack.c.l.b16 %v1196
    %v1254 = vunpack.c.l.b16 %v1197
    %v1255 = vunpack.c.l.b16 %v1198
    %v1256 = vunpack.c.l.b16 %v1199
    %v1257 = vunpack.c.l.b16 %v1200
    %v1258 = vpack.c.b16 %v1231, %v1230
    %v1259 = vpack.c.b16 %v1233, %v1232
    %v1260 = vpack.c.b16 %v1235, %v1234
    %v1261 = vpack.c.b16 %v1237, %v1236
    %v1262 = vpack.c.b16 %v1239, %v1238
    %v1263 = vpack.c.b16 %v1241, %v1240
    %v1264 = vpack.c.b16 %v1243, %v1242
    %v1265 = vpack.c.b16 %v1245, %v1244
    %v1266 = vpack.c.b16 %v1247, %v1246
    %v1267 = vpack.c.b16 %v1249, %v1248
    %v1268 = vpack.c.b16 %v1251, %v1250
    %v1269 = vpack.c.b16 %v1253, %v1252
    %v1270 = vpack.c.b16 %v1255, %v1254
    %v1271 = vpack.c.b16 %v1257, %v1256
    %v1287 = vsel %vm1084, %v1172, 0
    %1289 = vmatprep.subr.bf16.mxu0 0
    %1290 = vmatpush1.bf16.msra.mxu0 %v1258
    %1291 = vmatprep.subr.bf16.mxu0 0
    %1292 = vmatpush1.bf16.msra.mxu0 %v1259
    %1293 = vmatprep.subr.bf16.mxu0 0
    %1294 = vmatpush1.bf16.msra.mxu0 %v1260
    %1295 = vmatprep.subr.bf16.mxu0 0
    %1296 = vmatpush1.bf16.msra.mxu0 %v1261
    %1297 = vmatprep.subr.bf16.mxu0 0
    %1298 = vmatpush1.bf16.msra.mxu0 %v1262
    %1299 = vmatprep.subr.bf16.mxu0 0
    %1300 = vmatpush1.bf16.msra.mxu0 %v1263
    %1301 = vmatprep.subr.bf16.mxu0 0
    %1302 = vmatpush1.bf16.msra.mxu0 %v1264
    %1303 = vmatprep.subr.bf16.mxu0 0
    %1304 = vmatpush1.bf16.msra.mxu0 %v1265
    %1305 = vmatprep.subr.bf16.mxu0 0
    %1306 = vmatpush1.bf16.msra.mxu0 %v1266
    %1307 = vmatprep.subr.bf16.mxu0 0
    %1308 = vmatpush1.bf16.msra.mxu0 %v1267
    %1309 = vmatprep.subr.bf16.mxu0 0
    %1310 = vmatpush1.bf16.msra.mxu0 %v1268
    %1311 = vmatprep.subr.bf16.mxu0 0
    %1312 = vmatpush1.bf16.msra.mxu0 %v1269
    %1313 = vmatprep.subr.bf16.mxu0 0
    %1314 = vmatpush1.bf16.msra.mxu0 %v1270
    %1315 = vmatprep.subr.bf16.mxu0 0
    %1316 = vmatpush1.bf16.msra.mxu0 %v1271
    %1317 = vmatprep.subr.bf16.mxu0 0
    %1318 = vmatpush1.bf16.msra.mxu0 0
    %1319 = vmatprep.subr.bf16.mxu0 0
    %1320 = vmatpush1.bf16.msra.mxu0 0
    %1321 = vmatprep.mubr.bf16.mxu0 %v1287
    %1322 = vmatmul.mubr.bf16.gmra.mrb[0].mxu0 %v1171
    %v1323 = vpop.f32.mrb[0].mxu0
    %v1324 = vadd.f32 %v1201, %v1323
    %v1325 = vpop.f32.mrb[0].mxu0
    %v1326 = vpop.f32.mrb[0].mxu0
    %v1327 = vpop.f32.mrb[0].mxu0
    %1328 = vdwg.mxu0
    %v1329 = vxor.u32 %v1324, 2147483648
    %v1330 = vmul.f32 %v1329, 1.442695
    %v1331 = vpow.pop %v1330
    %v1332 = vadd.f32 %v1331, 1.0
    %v1333 = vrcp.pop %v1332
    %v1334 = vmul.f32 1.0, %v1333
    %1335 = vst.msk [vmem:[#allocation9] sm:$0xff] %vm96, %v1334
    %s1336 = sld [smem:[#allocation11 + $0x2]]
    %v1337 = vld [vmem:[#allocation7] sm:$0xff]
    %v1338 = vld [vmem:[#allocation7 + $0x8] sm:$0xff]
    %v1339 = vpack.c.bf16 %v1337, %v1337
    %v1340 = vpack.c.bf16 %v1338, %v1338
    %v1341 = vld [vmem:[#allocation19] sm:$0xf]
    %v1342 = vld [vmem:[#allocation19 + $0x4] sm:$0xf]
    %v1343 = vld [vmem:[#allocation19 + $0x8] sm:$0xf]
    %v1344 = vld [vmem:[#allocation19 + $0xc] sm:$0xf]
    %v1345 = vld [vmem:[#allocation19 + $0x10] sm:$0xf]
    %v1346 = vld [vmem:[#allocation19 + $0x14] sm:$0xf]
    %v1347 = vld [vmem:[#allocation19 + $0x18] sm:$0xf]
    %v1348 = vld [vmem:[#allocation19 + $0x1c] sm:$0xf]
    %v1349 = vld [vmem:[#allocation19 + $0x20] sm:$0xf]
    %v1350 = vld [vmem:[#allocation19 + $0x24] sm:$0xf]
    %v1351 = vld [vmem:[#allocation19 + $0x28] sm:$0xf]
    %v1352 = vld [vmem:[#allocation19 + $0x2c] sm:$0xf]
    %v1353 = vld [vmem:[#allocation19 + $0x30] sm:$0xf]
    %v1354 = vld [vmem:[#allocation19 + $0x34] sm:$0xf]
    %v1355 = vld [vmem:[#allocation19 + $0x38] sm:$0xf]
    %v1356 = vld [vmem:[#allocation19 + $0x3c] sm:$0xf]
    %v1357 = vld [vmem:[#allocation19 + $0x40] sm:$0xf]
    %v1358 = vld [vmem:[#allocation19 + $0x44] sm:$0xf]
    %v1359 = vld [vmem:[#allocation19 + $0x48] sm:$0xf]
    %v1360 = vld [vmem:[#allocation19 + $0x4c] sm:$0xf]
    %v1361 = vld [vmem:[#allocation19 + $0x50] sm:$0xf]
    %v1362 = vld [vmem:[#allocation19 + $0x54] sm:$0xf]
    %v1363 = vld [vmem:[#allocation19 + $0x58] sm:$0xf]
    %v1364 = vld [vmem:[#allocation19 + $0x5c] sm:$0xf]
    %v1365 = vld [vmem:[#allocation19 + $0x60] sm:$0xf]
    %v1366 = vld [vmem:[#allocation19 + $0x64] sm:$0xf]
    %v1367 = vld [vmem:[#allocation19 + $0x68] sm:$0xf]
    %v1368 = vld [vmem:[#allocation19 + $0x6c] sm:$0xf]
    %v1369 = vstv %s1336
    %v1398 = vunpack.c.l.b16 %v1341
    %v1399 = vunpack.c.l.b16 %v1342
    %v1400 = vunpack.c.l.b16 %v1343
    %v1401 = vunpack.c.l.b16 %v1344
    %v1402 = vunpack.c.l.b16 %v1345
    %v1403 = vunpack.c.l.b16 %v1346
    %v1404 = vunpack.c.l.b16 %v1347
    %v1405 = vunpack.c.l.b16 %v1348
    %v1406 = vunpack.c.l.b16 %v1349
    %v1407 = vunpack.c.l.b16 %v1350
    %v1408 = vunpack.c.l.b16 %v1351
    %v1409 = vunpack.c.l.b16 %v1352
    %v1410 = vunpack.c.l.b16 %v1353
    %v1411 = vunpack.c.l.b16 %v1354
    %v1412 = vunpack.c.l.b16 %v1355
    %v1413 = vunpack.c.l.b16 %v1356
    %v1414 = vunpack.c.l.b16 %v1357
    %v1415 = vunpack.c.l.b16 %v1358
    %v1416 = vunpack.c.l.b16 %v1359
    %v1417 = vunpack.c.l.b16 %v1360
    %v1418 = vunpack.c.l.b16 %v1361
    %v1419 = vunpack.c.l.b16 %v1362
    %v1420 = vunpack.c.l.b16 %v1363
    %v1421 = vunpack.c.l.b16 %v1364
    %v1422 = vunpack.c.l.b16 %v1365
    %v1423 = vunpack.c.l.b16 %v1366
    %v1424 = vunpack.c.l.b16 %v1367
    %v1425 = vunpack.c.l.b16 %v1368
    %v1426 = vpack.c.b16 %v1399, %v1398
    %v1427 = vpack.c.b16 %v1401, %v1400
    %v1428 = vpack.c.b16 %v1403, %v1402
    %v1429 = vpack.c.b16 %v1405, %v1404
    %v1430 = vpack.c.b16 %v1407, %v1406
    %v1431 = vpack.c.b16 %v1409, %v1408
    %v1432 = vpack.c.b16 %v1411, %v1410
    %v1433 = vpack.c.b16 %v1413, %v1412
    %v1434 = vpack.c.b16 %v1415, %v1414
    %v1435 = vpack.c.b16 %v1417, %v1416
    %v1436 = vpack.c.b16 %v1419, %v1418
    %v1437 = vpack.c.b16 %v1421, %v1420
    %v1438 = vpack.c.b16 %v1423, %v1422
    %v1439 = vpack.c.b16 %v1425, %v1424
    %v1455 = vsel %vm1084, %v1340, 0
    %1457 = vmatprep.subr.bf16.mxu0 0
    %1458 = vmatpush1.bf16.msra.mxu0 %v1426
    %1459 = vmatprep.subr.bf16.mxu0 0
    %1460 = vmatpush1.bf16.msra.mxu0 %v1427
    %1461 = vmatprep.subr.bf16.mxu0 0
    %1462 = vmatpush1.bf16.msra.mxu0 %v1428
    %1463 = vmatprep.subr.bf16.mxu0 0
    %1464 = vmatpush1.bf16.msra.mxu0 %v1429
    %1465 = vmatprep.subr.bf16.mxu0 0
    %1466 = vmatpush1.bf16.msra.mxu0 %v1430
    %1467 = vmatprep.subr.bf16.mxu0 0
    %1468 = vmatpush1.bf16.msra.mxu0 %v1431
    %1469 = vmatprep.subr.bf16.mxu0 0
    %1470 = vmatpush1.bf16.msra.mxu0 %v1432
    %1471 = vmatprep.subr.bf16.mxu0 0
    %1472 = vmatpush1.bf16.msra.mxu0 %v1433
    %1473 = vmatprep.subr.bf16.mxu0 0
    %1474 = vmatpush1.bf16.msra.mxu0 %v1434
    %1475 = vmatprep.subr.bf16.mxu0 0
    %1476 = vmatpush1.bf16.msra.mxu0 %v1435
    %1477 = vmatprep.subr.bf16.mxu0 0
    %1478 = vmatpush1.bf16.msra.mxu0 %v1436
    %1479 = vmatprep.subr.bf16.mxu0 0
    %1480 = vmatpush1.bf16.msra.mxu0 %v1437
    %1481 = vmatprep.subr.bf16.mxu0 0
    %1482 = vmatpush1.bf16.msra.mxu0 %v1438
    %1483 = vmatprep.subr.bf16.mxu0 0
    %1484 = vmatpush1.bf16.msra.mxu0 %v1439
    %1485 = vmatprep.subr.bf16.mxu0 0
    %1486 = vmatpush1.bf16.msra.mxu0 0
    %1487 = vmatprep.subr.bf16.mxu0 0
    %1488 = vmatpush1.bf16.msra.mxu0 0
    %1489 = vmatprep.mubr.bf16.mxu0 %v1455
    %1490 = vmatmul.mubr.bf16.gmra.mrb[0].mxu0 %v1339
    %v1491 = vpop.f32.mrb[0].mxu0
    %v1492 = vadd.f32 %v1369, %v1491
    %v1493 = vpop.f32.mrb[0].mxu0
    %v1494 = vpop.f32.mrb[0].mxu0
    %v1495 = vpop.f32.mrb[0].mxu0
    %1496 = vdwg.mxu0
    %v1497 = vxor.u32 %v1492, 2147483648
    %v1498 = vmul.f32 %v1497, 1.442695
    %v1499 = vpow.pop %v1498
    %v1500 = vadd.f32 %v1499, 1.0
    %v1501 = vrcp.pop %v1500
    %v1502 = vmul.f32 1.0, %v1501
    %1503 = vst.msk [vmem:[#allocation10] sm:$0xff] %vm96, %v1502
    %v1504 = vld [vmem:[#allocation8] sm:$0xff]
    %v1505 = vld [vmem:[#allocation8 + $0x8] sm:$0xff]
    %v1506 = vld [vmem:[#allocation9] sm:$0xf]
    %v1507 = vld [vmem:[#allocation10] sm:$0xf]
    %v1510 = vunpack.c.l.s4 1966171168
    %v1511 = vunpack.c.0.s8 %v1510
    %v1512 = vlaneseq
    %v1513 = vshrl.u32 %v1512, 7
    %v1514 = vsub.s32 %v1511, %v1513
    %v1515 = vrot.slane %v1506, %v1514
    %v1516 = vcombine.high %v1515, %v1515
    %v1518 = vunpack.c.l.s4 1966171168
    %v1519 = vunpack.c.0.s8 %v1518
    %v1520 = vlaneseq
    %v1521 = vshrl.u32 %v1520, 7
    %v1522 = vsub.s32 %v1519, %v1521
    %v1523 = vrot.slane %v1515, %v1522
    %v1525 = vunpack.c.l.s4 1966171168
    %v1526 = vunpack.c.0.s8 %v1525
    %v1527 = vlaneseq
    %v1528 = vshrl.u32 %v1527, 7
    %v1529 = vsub.s32 %v1526, %v1528
    %v1530 = vrot.slane %v1516, %v1529
    %v1531 = vcombine.high %v1523, %v1523
    %v1532 = vcombine.high %v1530, %v1530
    %v1533 = vlaneseq
    %v1534 = vshrl.u32 %v1533, 7
    %v1535 = vsub.s32 0, %v1534
    %v1536 = vrot.slane %v1523, %v1535
    %v1537 = vlaneseq
    %v1538 = vshrl.u32 %v1537, 7
    %v1539 = vsub.s32 0, %v1538
    %v1540 = vrot.slane %v1530, %v1539
    %v1541 = vlaneseq
    %v1542 = vshrl.u32 %v1541, 7
    %v1543 = vsub.s32 0, %v1542
    %v1544 = vrot.slane %v1531, %v1543
    %v1545 = vlaneseq
    %v1546 = vshrl.u32 %v1545, 7
    %v1547 = vsub.s32 0, %v1546
    %v1548 = vrot.slane %v1532, %v1547
    %v1553 = vadd.f32 %v1504, %v1536
    %v1554 = vadd.f32 %v1505, %v1536
    %v1555 = vadd.f32 %v1504, %v1540
    %v1556 = vadd.f32 %v1505, %v1540
    %v1557 = vadd.f32 %v1504, %v1544
    %v1558 = vadd.f32 %v1505, %v1544
    %v1559 = vadd.f32 %v1504, %v1548
    %v1560 = vadd.f32 %v1505, %v1548
    %v1561 = vlaneseq
    %v1562 = vshrl.u32 %v1561, 7
    %v1563 = vsub.s32 0, %v1562
    %v1564 = vrot.slane %v1507, %v1563
    %1566 = vbcast.lane.b32.xlu0 %v1564, 256
    %v1567 = vpop.permute.xlu0 %1566
    %s1569 = sor.u32 256, 8
    %1570 = vbcast.lane.b32.xlu0 %v1564, %s1569
    %v1571 = vpop.permute.xlu0 %1570
    %v1572 = vlaneseq
    %v1573 = vshrl.u32 %v1572, 7
    %v1574 = vsub.s32 1, %v1573
    %v1575 = vrot.slane %v1507, %v1574
    %1577 = vbcast.lane.b32.xlu0 %v1575, 256
    %v1578 = vpop.permute.xlu0 %1577
    %s1580 = sor.u32 256, 8
    %1581 = vbcast.lane.b32.xlu0 %v1575, %s1580
    %v1582 = vpop.permute.xlu0 %1581
    %v1583 = vlaneseq
    %v1584 = vshrl.u32 %v1583, 7
    %v1585 = vsub.s32 2, %v1584
    %v1586 = vrot.slane %v1507, %v1585
    %1588 = vbcast.lane.b32.xlu0 %v1586, 256
    %v1589 = vpop.permute.xlu0 %1588
    %s1591 = sor.u32 256, 8
    %1592 = vbcast.lane.b32.xlu0 %v1586, %s1591
    %v1593 = vpop.permute.xlu0 %1592
    %v1594 = vlaneseq
    %v1595 = vshrl.u32 %v1594, 7
    %v1596 = vsub.s32 3, %v1595
    %v1597 = vrot.slane %v1507, %v1596
    %1599 = vbcast.lane.b32.xlu0 %v1597, 256
    %v1600 = vpop.permute.xlu0 %1599
    %s1602 = sor.u32 256, 8
    %1603 = vbcast.lane.b32.xlu0 %v1597, %s1602
    %v1604 = vpop.permute.xlu0 %1603
    %v1605 = vadd.f32 %v1553, %v1567
    %v1606 = vadd.f32 %v1554, %v1571
    %v1607 = vadd.f32 %v1555, %v1578
    %v1608 = vadd.f32 %v1556, %v1582
    %v1609 = vadd.f32 %v1557, %v1589
    %v1610 = vadd.f32 %v1558, %v1593
    %v1611 = vadd.f32 %v1559, %v1600
    %v1612 = vadd.f32 %v1560, %v1604
    %v1613 = vmul.f32 %v1605, 0.33333334
    %v1614 = vmul.f32 %v1606, 0.33333334
    %v1615 = vmul.f32 %v1607, 0.33333334
    %v1616 = vmul.f32 %v1608, 0.33333334
    %v1617 = vmul.f32 %v1609, 0.33333334
    %v1618 = vmul.f32 %v1610, 0.33333334
    %v1619 = vmul.f32 %v1611, 0.33333334
    %v1620 = vmul.f32 %v1612, 0.33333334
    %v1621 = vld [vmem:[#allocation15] sm:$0xff]
    %v1622 = vld [vmem:[#allocation15 + $0x8] sm:$0xff]
    %v1623 = vld [vmem:[#allocation15 + $0x10] sm:$0xff]
    %v1624 = vld [vmem:[#allocation15 + $0x18] sm:$0xff]
    %v1625 = vld [vmem:[#allocation15 + $0x20] sm:$0xff]
    %v1626 = vld [vmem:[#allocation15 + $0x28] sm:$0xff]
    %v1627 = vld [vmem:[#allocation15 + $0x30] sm:$0xff]
    %v1628 = vld [vmem:[#allocation15 + $0x38] sm:$0xff]
    %v1629 = vmul.f32 %v1621, %v1613
    %v1630 = vmul.f32 %v1622, %v1614
    %v1631 = vmul.f32 %v1623, %v1615
    %v1632 = vmul.f32 %v1624, %v1616
    %v1633 = vmul.f32 %v1625, %v1617
    %v1634 = vmul.f32 %v1626, %v1618
    %v1635 = vmul.f32 %v1627, %v1619
    %v1636 = vmul.f32 %v1628, %v1620
    %1637 = vst.msk [vmem:[#allocation21] sm:$0xff] %vm96, %v1629
    %1638 = vst.msk [vmem:[#allocation21 + $0x8] sm:$0xff] %vm96, %v1630
    %1639 = vst.msk [vmem:[#allocation21 + $0x10] sm:$0xff] %vm96, %v1631
    %1640 = vst.msk [vmem:[#allocation21 + $0x18] sm:$0xff] %vm96, %v1632
    %1641 = vst.msk [vmem:[#allocation21 + $0x20] sm:$0xff] %vm96, %v1633
    %1642 = vst.msk [vmem:[#allocation21 + $0x28] sm:$0xff] %vm96, %v1634
    %1643 = vst.msk [vmem:[#allocation21 + $0x30] sm:$0xff] %vm96, %v1635
    %1644 = vst.msk [vmem:[#allocation21 + $0x38] sm:$0xff] %vm96, %v1636
    %v1645 = vld [vmem:[#allocation8 + $0x10] sm:$0xff]
    %v1646 = vld [vmem:[#allocation8 + $0x18] sm:$0xff]
    %v1647 = vld [vmem:[#allocation9 + $0x4] sm:$0xf]
    %v1648 = vld [vmem:[#allocation10 + $0x4] sm:$0xf]
    %v1651 = vunpack.c.l.s4 1966171168
    %v1652 = vunpack.c.0.s8 %v1651
    %v1653 = vlaneseq
    %v1654 = vshrl.u32 %v1653, 7
    %v1655 = vsub.s32 %v1652, %v1654
    %v1656 = vrot.slane %v1647, %v1655
    %v1657 = vcombine.high %v1656, %v1656
    %v1659 = vunpack.c.l.s4 1966171168
    %v1660 = vunpack.c.0.s8 %v1659
    %v1661 = vlaneseq
    %v1662 = vshrl.u32 %v1661, 7
    %v1663 = vsub.s32 %v1660, %v1662
    %v1664 = vrot.slane %v1656, %v1663
    %v1666 = vunpack.c.l.s4 1966171168
    %v1667 = vunpack.c.0.s8 %v1666
    %v1668 = vlaneseq
    %v1669 = vshrl.u32 %v1668, 7
    %v1670 = vsub.s32 %v1667, %v1669
    %v1671 = vrot.slane %v1657, %v1670
    %v1672 = vcombine.high %v1664, %v1664
    %v1673 = vcombine.high %v1671, %v1671
    %v1674 = vlaneseq
    %v1675 = vshrl.u32 %v1674, 7
    %v1676 = vsub.s32 0, %v1675
    %v1677 = vrot.slane %v1664, %v1676
    %v1678 = vlaneseq
    %v1679 = vshrl.u32 %v1678, 7
    %v1680 = vsub.s32 0, %v1679
    %v1681 = vrot.slane %v1671, %v1680
    %v1682 = vlaneseq
    %v1683 = vshrl.u32 %v1682, 7
    %v1684 = vsub.s32 0, %v1683
    %v1685 = vrot.slane %v1672, %v1684
    %v1686 = vlaneseq
    %v1687 = vshrl.u32 %v1686, 7
    %v1688 = vsub.s32 0, %v1687
    %v1689 = vrot.slane %v1673, %v1688
    %v1694 = vadd.f32 %v1645, %v1677
    %v1695 = vadd.f32 %v1646, %v1677
    %v1696 = vadd.f32 %v1645, %v1681
    %v1697 = vadd.f32 %v1646, %v1681
    %v1698 = vadd.f32 %v1645, %v1685
    %v1699 = vadd.f32 %v1646, %v1685
    %v1700 = vadd.f32 %v1645, %v1689
    %v1701 = vadd.f32 %v1646, %v1689
    %v1702 = vlaneseq
    %v1703 = vshrl.u32 %v1702, 7
    %v1704 = vsub.s32 0, %v1703
    %v1705 = vrot.slane %v1648, %v1704
    %1707 = vbcast.lane.b32.xlu0 %v1705, 256
    %v1708 = vpop.permute.xlu0 %1707
    %s1710 = sor.u32 256, 8
    %1711 = vbcast.lane.b32.xlu0 %v1705, %s1710
    %v1712 = vpop.permute.xlu0 %1711
    %v1713 = vlaneseq
    %v1714 = vshrl.u32 %v1713, 7
    %v1715 = vsub.s32 1, %v1714
    %v1716 = vrot.slane %v1648, %v1715
    %1718 = vbcast.lane.b32.xlu0 %v1716, 256
    %v1719 = vpop.permute.xlu0 %1718
    %s1721 = sor.u32 256, 8
    %1722 = vbcast.lane.b32.xlu0 %v1716, %s1721
    %v1723 = vpop.permute.xlu0 %1722
    %v1724 = vlaneseq
    %v1725 = vshrl.u32 %v1724, 7
    %v1726 = vsub.s32 2, %v1725
    %v1727 = vrot.slane %v1648, %v1726
    %1729 = vbcast.lane.b32.xlu0 %v1727, 256
    %v1730 = vpop.permute.xlu0 %1729
    %s1732 = sor.u32 256, 8
    %1733 = vbcast.lane.b32.xlu0 %v1727, %s1732
    %v1734 = vpop.permute.xlu0 %1733
    %v1735 = vlaneseq
    %v1736 = vshrl.u32 %v1735, 7
    %v1737 = vsub.s32 3, %v1736
    %v1738 = vrot.slane %v1648, %v1737
    %1740 = vbcast.lane.b32.xlu0 %v1738, 256
    %v1741 = vpop.permute.xlu0 %1740
    %s1743 = sor.u32 256, 8
    %1744 = vbcast.lane.b32.xlu0 %v1738, %s1743
    %v1745 = vpop.permute.xlu0 %1744
    %v1746 = vadd.f32 %v1694, %v1708
    %v1747 = vadd.f32 %v1695, %v1712
    %v1748 = vadd.f32 %v1696, %v1719
    %v1749 = vadd.f32 %v1697, %v1723
    %v1750 = vadd.f32 %v1698, %v1730
    %v1751 = vadd.f32 %v1699, %v1734
    %v1752 = vadd.f32 %v1700, %v1741
    %v1753 = vadd.f32 %v1701, %v1745
    %v1754 = vmul.f32 %v1746, 0.33333334
    %v1755 = vmul.f32 %v1747, 0.33333334
    %v1756 = vmul.f32 %v1748, 0.33333334
    %v1757 = vmul.f32 %v1749, 0.33333334
    %v1758 = vmul.f32 %v1750, 0.33333334
    %v1759 = vmul.f32 %v1751, 0.33333334
    %v1760 = vmul.f32 %v1752, 0.33333334
    %v1761 = vmul.f32 %v1753, 0.33333334
    %v1762 = vld [vmem:[%s521] sm:$0xff]
    %v1763 = vld [vmem:[%s521 + $0x8] sm:$0xff]
    %v1764 = vld [vmem:[%s521 + $0x10] sm:$0xff]
    %v1765 = vld [vmem:[%s521 + $0x18] sm:$0xff]
    %v1766 = vld [vmem:[%s521 + $0x20] sm:$0xff]
    %v1767 = vld [vmem:[%s521 + $0x28] sm:$0xff]
    %v1768 = vld [vmem:[%s521 + $0x30] sm:$0xff]
    %v1769 = vld [vmem:[%s521 + $0x38] sm:$0xff]
    %v1770 = vmul.f32 %v1762, %v1754
    %v1771 = vmul.f32 %v1763, %v1755
    %v1772 = vmul.f32 %v1764, %v1756
    %v1773 = vmul.f32 %v1765, %v1757
    %v1774 = vmul.f32 %v1766, %v1758
    %v1775 = vmul.f32 %v1767, %v1759
    %v1776 = vmul.f32 %v1768, %v1760
    %v1777 = vmul.f32 %v1769, %v1761
    %s1778 = scalar_lea.vmem [#allocation21], 64
    %1779 = vst.msk [vmem:[%s1778] sm:$0xff] %vm96, %v1770
    %1780 = vst.msk [vmem:[%s1778 + $0x8] sm:$0xff] %vm96, %v1771
    %1781 = vst.msk [vmem:[%s1778 + $0x10] sm:$0xff] %vm96, %v1772
    %1782 = vst.msk [vmem:[%s1778 + $0x18] sm:$0xff] %vm96, %v1773
    %1783 = vst.msk [vmem:[%s1778 + $0x20] sm:$0xff] %vm96, %v1774
    %1784 = vst.msk [vmem:[%s1778 + $0x28] sm:$0xff] %vm96, %v1775
    %1785 = vst.msk [vmem:[%s1778 + $0x30] sm:$0xff] %vm96, %v1776
    %1786 = vst.msk [vmem:[%s1778 + $0x38] sm:$0xff] %vm96, %v1777
    // Predicated region
    $region42: #{mvdfe_forward.1} parent=1 // pred_check
      _
    $region43: #{mvdfe_forward.1} parent=1 // pred_check_branch
      %1788 = sbr.rel (0) target = $region45
    $region44: #{mvdfe_forward.1} parent=1 // pred_region
      %s1790 = ssub.s32 2048, 2048
      %1791 = vsyncadd [#allocation13], %s1790
      %s1792 = sshll.u32 [#allocation21], 4
      %s1793 = int_to_ptr.vmem [resolvable:$true] %s1792
      %1798 = dma.vmem_to_hbm [thread:$0]  %s1793, 2048, %s5, [#allocation13], 128, 128, 8
    $region45: #{mvdfe_forward.1} parent=1 // pred_fallthru
      _
    // Predicated region
    $region46: #{mvdfe_forward.1} parent=1 // pred_check
      _
    $region47: #{mvdfe_forward.1} parent=1 // pred_check_branch
      %1800 = sbr.rel (0) target = $region49
    $region48: #{mvdfe_forward.1} parent=1 // pred_region
      %1801 = dma.done [#allocation13], 2048
    $region49: #{mvdfe_forward.1} parent=1 // pred_fallthru
      _
    %1802 = vsyncpa [#allocation12], 1
    %1803 = vsyncpa [#allocation17], 1
    %1804 = vsyncpa [#allocation20], 1
    %1805 = vsyncpa [#allocation13], 1
    %1806 = vsyncpa [#allocation14], 1

</llo_original>
